<compile_context>
chip_gen: v7x
topology: tpu7x:2x2x1
jax: 0.10.0
libtpu: 0.0.40
codegen_flags: <defaults>
</compile_context>

<pallas_src>
import functools

import numpy as np
import jax
import jax.numpy as jnp
from jax.experimental import pallas as pl
from jax.experimental.pallas import tpu as pltpu

# Sizes implied by PNet's canonical 12x12 input.
_IN_H = _IN_W = 12
_C_IN = 3
_K_IN = _IN_H * _IN_W * _C_IN            # 432 flattened input columns (c, h, w)
_C1 = 10                                 # conv1 channels
_GROUP = 256                             # 5*5*10 = 250 pooled cols, padded to 2*128
_H1_COLS = 4 * _GROUP                    # 4 pool corners -> 1024
_C2 = 16
_H2_COLS = 3 * 3 * _C2                   # 144
_C3 = 32
_HEAD_COLS = 2 + 4 + 10                  # 16 = cls | bbox | landmark
_GRANULE = 16                            # bf16 sublane granule for batch rows


def _round_up(v, m):
    return -(-v // m) * m


# ----------------------------------------------------------------------------
# The fused Pallas kernel
# ----------------------------------------------------------------------------
def _pnet_fused_kernel(x_ref,
                       a1_ref, b1_ref, al1_ref,
                       a2_ref, b2_ref, al2_ref,
                       a3_ref, b3_ref, al3_ref,
                       wh_ref, bh_ref,
                       out_ref):
    """Whole PNet forward for one batch tile, entirely on-chip."""
    x = x_ref[...]                                                    # (bn, 432) bf16

    # conv1 + MaxPool2d(2, 2, ceil_mode=True) fused: four corner-group matmuls
    # reduced incrementally with max, then one bias-add + PReLU on the pooled
    # tensor.  Exact reorder: bias is identical across the 4 pool corners and
    # PReLU with alpha >= 0 is monotone, so pool commutes with bias and PReLU.
    pooled = jnp.dot(x, a1_ref[:, 0:_GROUP], preferred_element_type=jnp.float32)
    for g in range(1, 4):
        pooled = jnp.maximum(
            pooled,
            jnp.dot(x, a1_ref[:, g * _GROUP:(g + 1) * _GROUP],
                    preferred_element_type=jnp.float32))
    pooled = pooled + b1_ref[...]
    pooled = jnp.where(pooled > 0.0, pooled, al1_ref[...] * pooled)   # (bn, 256) f32

    # conv2 + PReLU2
    h2 = jnp.dot(pooled.astype(jnp.bfloat16), a2_ref[...],
                 preferred_element_type=jnp.float32) + b2_ref[...]
    h2 = jnp.where(h2 > 0.0, h2, al2_ref[...] * h2)                   # (bn, 144)

    # conv3 + PReLU3
    h3 = jnp.dot(h2.astype(jnp.bfloat16), a3_ref[...],
                 preferred_element_type=jnp.float32) + b3_ref[...]
    h3 = jnp.where(h3 > 0.0, h3, al3_ref[...] * h3)                   # (bn, 32)

    # Fused heads: [conv4_1 | conv4_2 | conv4_3] as one matmul.
    out_ref[...] = (jnp.dot(h3.astype(jnp.bfloat16), wh_ref[...],
                            preferred_element_type=jnp.float32) + bh_ref[...])


# ----------------------------------------------------------------------------
# Parameters (deterministic, Kaiming-normal fan_out like the PyTorch __init__)
# ----------------------------------------------------------------------------
def init_params(key):
    """Random parameters in natural conv layout (kh, kw, cin, cout)."""
    def kaiming(k, kh, kw, cin, cout):
        fan_out = cout * kh * kw
        std = (2.0 / fan_out) ** 0.5
        return std * jax.random.normal(k, (kh, kw, cin, cout), jnp.float32)

    def bias(k, cout):
        return jax.random.uniform(k, (cout,), jnp.float32, -0.1, 0.1)

    ks = jax.random.split(key, 12)
    return {
        "w1": kaiming(ks[0], 3, 3, 3, 10),    "b1": bias(ks[1], 10),
        "w2": kaiming(ks[2], 3, 3, 10, 16),   "b2": bias(ks[3], 16),
        "w3": kaiming(ks[4], 3, 3, 16, 32),   "b3": bias(ks[5], 32),
        "w41": kaiming(ks[6], 1, 1, 32, 2),   "b41": bias(ks[7], 2),
        "w42": kaiming(ks[8], 1, 1, 32, 4),   "b42": bias(ks[9], 4),
        "w43": kaiming(ks[10], 1, 1, 32, 10), "b43": bias(ks[11], 10),
        # nn.PReLU() default: one shared parameter initialised to 0.25.
        "a1": jnp.float32(0.25), "a2": jnp.float32(0.25), "a3": jnp.float32(0.25),
    }


def lower_params(params):
    """One-time packing of PNet weights into the dense matmul operands consumed
    by the fused kernel.  Matmul operands are stored bf16 (MXU-native); biases
    and PReLU slopes stay f32 (activations / accumulation are f32)."""
    w1 = np.asarray(params["w1"], np.float32); b1 = np.asarray(params["b1"], np.float32)
    w2 = np.asarray(params["w2"], np.float32); b2 = np.asarray(params["b2"], np.float32)
    w3 = np.asarray(params["w3"], np.float32); b3 = np.asarray(params["b3"], np.float32)

    # The in-kernel pool <-> (bias, PReLU) reorder is exact only for alpha >= 0.
    alphas = [float(params["a1"]), float(params["a2"]), float(params["a3"])]
    assert alphas[0] >= 0.0, "conv1 pool/PReLU fusion requires PReLU slope >= 0"

    # conv1: rows = input in NCHW-flat (c, h, w) order (no wrapper transpose);
    # cols = (pool corner, ph, pw, cout), corner-major, each corner padded
    # 250 -> 256 so the 2x2/stride-2 pool is a max over 4 matmul outputs.
    a1 = np.zeros((_K_IN, _H1_COLS), np.float32)
    for oh in range(10):
        for ow in range(10):
            ph, di = divmod(oh, 2)
            pw, dj = divmod(ow, 2)
            col0 = (di * 2 + dj) * _GROUP + (ph * 5 + pw) * _C1
            for kh in range(3):
                for kw in range(3):
                    for c in range(_C_IN):
                        row = c * (_IN_H * _IN_W) + (oh + kh) * _IN_W + (ow + kw)
                        a1[row, col0:col0 + _C1] = w1[kh, kw, c]
    # Bias / PReLU slope for ONE pooled corner group (identical across corners).
    b1_row = np.zeros((1, _GROUP), np.float32)
    for p in range(25):
        b1_row[0, p * _C1:(p + 1) * _C1] = b1
    al1 = np.full((1, _GROUP), alphas[0], np.float32)

    # conv2: rows = pooled (ph, pw, c) [pad rows 250..255 stay 0]; cols = (oh, ow, cout).
    a2 = np.zeros((_GROUP, _H2_COLS), np.float32)
    for oh in range(3):
        for ow in range(3):
            col0 = (oh * 3 + ow) * _C2
            for kh in range(3):
                for kw in range(3):
                    row0 = ((oh + kh) * 5 + (ow + kw)) * _C1
                    a2[row0:row0 + _C1, col0:col0 + _C2] = w2[kh, kw]
    b2_row = np.tile(b2, 9)[None, :]
    al2 = np.full((1, _H2_COLS), alphas[1], np.float32)

    # conv3: 3x3 input -> 1x1 output, already a plain (144, 32) matmul.
    a3 = w3.reshape(_H2_COLS, _C3)
    b3_row = b3[None, :]
    al3 = np.full((1, _C3), alphas[2], np.float32)

    # Fused 1x1-conv heads.
    wh = np.concatenate([np.asarray(params["w41"], np.float32).reshape(_C3, 2),
                         np.asarray(params["w42"], np.float32).reshape(_C3, 4),
                         np.asarray(params["w43"], np.float32).reshape(_C3, 10)], axis=1)
    bh = np.concatenate([np.asarray(params["b41"], np.float32),
                         np.asarray(params["b42"], np.float32),
                         np.asarray(params["b43"], np.float32)])[None, :]

    f32 = lambda a: jnp.asarray(a, jnp.float32)
    bf16 = lambda a: jnp.asarray(a, jnp.bfloat16)
    return {
        "a1": bf16(a1), "b1": f32(b1_row), "al1": f32(al1),
        "a2": bf16(a2), "b2": f32(b2_row), "al2": f32(al2),
        "a3": bf16(a3), "b3": f32(b3_row), "al3": f32(al3),
        "wh": bf16(wh), "bh": f32(bh),
    }


# ----------------------------------------------------------------------------
# Forward pass
# ----------------------------------------------------------------------------
def _choose_tiling(n, block_n):
    """Pick the batch tile and padded batch.  Targets >= 2 grid steps when the
    batch allows it (v7x has 2 TensorCores and the grid axis is 'parallel'),
    caps the tile at block_n, and limits padding waste to the 16-row granule."""
    n_g = _round_up(max(n, 1), _GRANULE)
    half = _round_up(-(-n_g // 2), _GRANULE)
    bn = max(_GRANULE, min(block_n, half))
    n_pad = _round_up(n_g, bn)
    return bn, n_pad


@functools.partial(jax.jit, static_argnames=("block_n",))
def pnet_forward(x_nchw, lowered, block_n=512):
    n = x_nchw.shape[0]
    # The (c, h, w) input ordering is baked into A1 at lowering time, so the
    # wrapper is a pure reshape (no HBM round-trip transpose) + bf16 cast.
    x_flat = x_nchw.reshape(n, _K_IN).astype(jnp.bfloat16)

    bn, n_pad = _choose_tiling(n, block_n)
    if n_pad != n:
        x_flat = jnp.pad(x_flat, ((0, n_pad - n), (0, 0)))

    const = lambda i: (0, 0)   # constant index_map: weights stay resident in VMEM
    out = pl.pallas_call(
        _pnet_fused_kernel,
        out_shape=jax.ShapeDtypeStruct((n_pad, _HEAD_COLS), jnp.float32),
        grid=(n_pad // bn,),
        in_specs=[
            pl.BlockSpec((bn, _K_IN), lambda i: (i, 0)),       # batch tile (bf16)
            pl.BlockSpec((_K_IN, _H1_COLS), const),            # A1 (bf16)
            pl.BlockSpec((1, _GROUP), const),                  # b1 (one pooled group)
            pl.BlockSpec((1, _GROUP), const),                  # prelu1 slope
            pl.BlockSpec((_GROUP, _H2_COLS), const),           # A2 (bf16)
            pl.BlockSpec((1, _H2_COLS), const),                # b2
            pl.BlockSpec((1, _H2_COLS), const),                # prelu2 slope
            pl.BlockSpec((_H2_COLS, _C3), const),              # A3 (bf16)
            pl.BlockSpec((1, _C3), const),                     # b3
            pl.BlockSpec((1, _C3), const),                     # prelu3 slope
            pl.BlockSpec((_C3, _HEAD_COLS), const),            # fused head weight (bf16)
            pl.BlockSpec((1, _HEAD_COLS), const),              # fused head bias
        ],
        out_specs=pl.BlockSpec((bn, _HEAD_COLS), lambda i: (i, 0)),
        compiler_params=pltpu.CompilerParams(
            dimension_semantics=("parallel",),                 # shard batch over TCs
            vmem_limit_bytes=32 * 1024 * 1024),
    )(x_flat,
      lowered["a1"], lowered["b1"], lowered["al1"],
      lowered["a2"], lowered["b2"], lowered["al2"],
      lowered["a3"], lowered["b3"], lowered["al3"],
      lowered["wh"], lowered["bh"])

    out = out[:n]
    # torch.squeeze(dim=2) twice collapses the 1x1 spatial dims -> (N,2),(N,4),(N,10).
    return out[:, 0:2], out[:, 2:6], out[:, 6:16]


# ----------------------------------------------------------------------------
# Pure-JAX reference (im2col convs, no Pallas, no lowering trick) for validation
# ----------------------------------------------------------------------------
def pnet_reference(x_nchw, params, *, bf16_operands=False):
    """With bf16_operands=True the matmul operands are rounded to bf16 (same
    quantization as the kernel) so the comparison isolates structural
    correctness from bf16 drift; with False it is the exact f32 torch math."""
    hp = jax.lax.Precision.HIGHEST
    q = ((lambda v: v.astype(jnp.bfloat16).astype(jnp.float32))
         if bf16_operands else (lambda v: v))

    def conv(x, w, b):
        kh, kw, cin, cout = w.shape
        n, h, ww, _ = x.shape
        oh, ow = h - kh + 1, ww - kw + 1
        cols = [x[:, i:i + oh, j:j + ow, :] for i in range(kh) for j in range(kw)]
        p = jnp.concatenate(cols, axis=-1).reshape(n * oh * ow, kh * kw * cin)
        y = jnp.dot(q(p), q(w.reshape(kh * kw * cin, cout)), precision=hp) + b
        return y.reshape(n, oh, ow, cout)

    prelu = lambda v, a: jnp.where(v > 0.0, v, a * v)

    x = jnp.transpose(x_nchw, (0, 2, 3, 1)).astype(jnp.float32)
    h1 = prelu(conv(x, params["w1"], params["b1"]), params["a1"])
    h1 = jnp.maximum(jnp.maximum(h1[:, 0::2, 0::2, :], h1[:, 0::2, 1::2, :]),
                     jnp.maximum(h1[:, 1::2, 0::2, :], h1[:, 1::2, 1::2, :]))
    h2 = prelu(conv(h1, params["w2"], params["b2"]), params["a2"])
    h3 = prelu(conv(h2, params["w3"], params["b3"]), params["a3"])   # (N,1,1,32)
    f = h3.reshape(x.shape[0], _C3)
    cls = jnp.dot(q(f), q(params["w41"].reshape(_C3, 2)), precision=hp) + params["b41"]
    box = jnp.dot(q(f), q(params["w42"].reshape(_C3, 4)), precision=hp) + params["b42"]
    lmk = jnp.dot(q(f), q(params["w43"].reshape(_C3, 10)), precision=hp) + params["b43"]
    return cls, box, lmk


if __name__ == "__main__":
    key = jax.random.PRNGKey(0)
    k_params, k_x1, k_x2 = jax.random.split(key, 3)
    params = init_params(k_params)
    lowered = lower_params(params)

    def check(x, name):
        cls_o, box_o, lmk_o = pnet_forward(x, lowered)
        jax.block_until_ready((cls_o, box_o, lmk_o))
        n = x.shape[0]
        assert cls_o.shape == (n, 2) and box_o.shape == (n, 4) and lmk_o.shape == (n, 10)
        # Structural check: reference with identical bf16 operand rounding.
        for got, ref in zip((cls_o, box_o, lmk_o),
                            pnet_reference(x, params, bf16_operands=True)):
            assert jnp.allclose(got, ref, rtol=1e-2, atol=1e-3), f"{name}: structural mismatch"
        # Fidelity check: full-f32 torch-semantics reference (bounds bf16 drift).
        for got, ref in zip((cls_o, box_o, lmk_o),
                            pnet_reference(x, params, bf16_operands=False)):
            assert jnp.allclose(got, ref, rtol=1e-1, atol=1e-1), f"{name}: bf16 drift too large"

    # Canonical tiny PNet input (12x12 makes conv3's output 1x1); small batch.
    check(jax.random.normal(k_x1, (2, 3, 12, 12), jnp.float32), "small")
    # Sliding-window sized batch: exercises tiling / padding / 2-step parallel grid.
    check(jax.random.normal(k_x2, (300, 3, 12, 12), jnp.float32), "tiled")

    print("KERNEL_OK")
</pallas_src>

<mosaic_0001>
module attributes {stable_mosaic.version = 11 : i64} {
  func.func @_pnet_fused_kernel(%arg0: i32, %arg1: memref<16x432xbf16, #tpu.memory_space<vmem>>, %arg2: memref<432x1024xbf16, #tpu.memory_space<vmem>>, %arg3: memref<1x256xf32, #tpu.memory_space<vmem>>, %arg4: memref<1x256xf32, #tpu.memory_space<vmem>>, %arg5: memref<256x144xbf16, #tpu.memory_space<vmem>>, %arg6: memref<1x144xf32, #tpu.memory_space<vmem>>, %arg7: memref<1x144xf32, #tpu.memory_space<vmem>>, %arg8: memref<144x32xbf16, #tpu.memory_space<vmem>>, %arg9: memref<1x32xf32, #tpu.memory_space<vmem>>, %arg10: memref<1x32xf32, #tpu.memory_space<vmem>>, %arg11: memref<32x16xbf16, #tpu.memory_space<vmem>>, %arg12: memref<1x16xf32, #tpu.memory_space<vmem>>, %arg13: memref<16x16xf32, #tpu.memory_space<vmem>>) attributes {dimension_semantics = [#tpu.dimension_semantics<parallel>], iteration_bounds = array<i64: 1>, scalar_prefetch = 0 : i64, scratch_operands = 0 : i64, tpu.core_type = #tpu.core_type<tc>, window_params = [{transform_indices = @transform_0, window_bounds = array<i64: 16, 432>}, {pipeline_mode = #tpu.pipeline_mode<synchronous>, transform_indices = @transform_1, window_bounds = array<i64: 432, 1024>}, {pipeline_mode = #tpu.pipeline_mode<synchronous>, transform_indices = @transform_2, window_bounds = array<i64: 1, 256>}, {pipeline_mode = #tpu.pipeline_mode<synchronous>, transform_indices = @transform_3, window_bounds = array<i64: 1, 256>}, {pipeline_mode = #tpu.pipeline_mode<synchronous>, transform_indices = @transform_4, window_bounds = array<i64: 256, 144>}, {pipeline_mode = #tpu.pipeline_mode<synchronous>, transform_indices = @transform_5, window_bounds = array<i64: 1, 144>}, {pipeline_mode = #tpu.pipeline_mode<synchronous>, transform_indices = @transform_6, window_bounds = array<i64: 1, 144>}, {pipeline_mode = #tpu.pipeline_mode<synchronous>, transform_indices = @transform_7, window_bounds = array<i64: 144, 32>}, {pipeline_mode = #tpu.pipeline_mode<synchronous>, transform_indices = @transform_8, window_bounds = array<i64: 1, 32>}, {pipeline_mode = #tpu.pipeline_mode<synchronous>, transform_indices = @transform_9, window_bounds = array<i64: 1, 32>}, {pipeline_mode = #tpu.pipeline_mode<synchronous>, transform_indices = @transform_10, window_bounds = array<i64: 32, 16>}, {pipeline_mode = #tpu.pipeline_mode<synchronous>, transform_indices = @transform_11, window_bounds = array<i64: 1, 16>}, {transform_indices = @transform_12, window_bounds = array<i64: 16, 16>}]} {
    %c0 = arith.constant 0 : index
    %c0_0 = arith.constant 0 : index
    %0 = vector.load %arg1[%c0, %c0_0] : memref<16x432xbf16, #tpu.memory_space<vmem>>, vector<16x432xbf16>
    %c0_1 = arith.constant 0 : index
    %c0_2 = arith.constant 0 : index
    %1 = vector.load %arg2[%c0_1, %c0_2] : memref<432x1024xbf16, #tpu.memory_space<vmem>>, vector<432x256xbf16>
    %cst = arith.constant dense<0.000000e+00> : vector<16x256xf32>
    %2 = tpu.matmul %0, %1, %cst {dimension_numbers = #tpu.dot_dimension_numbers<[1], [0], [0], [1], [0, 0, 1, 1], [], []>} : vector<16x432xbf16>, vector<432x256xbf16>, vector<16x256xf32> -> vector<16x256xf32>
    %c0_3 = arith.constant 0 : index
    %c256 = arith.constant 256 : index
    %3 = vector.load %arg2[%c0_3, %c256] : memref<432x1024xbf16, #tpu.memory_space<vmem>>, vector<432x256xbf16>
    %cst_4 = arith.constant dense<0.000000e+00> : vector<16x256xf32>
    %4 = tpu.matmul %0, %3, %cst_4 {dimension_numbers = #tpu.dot_dimension_numbers<[1], [0], [0], [1], [0, 0, 1, 1], [], []>} : vector<16x432xbf16>, vector<432x256xbf16>, vector<16x256xf32> -> vector<16x256xf32>
    %5 = arith.maximumf %2, %4 : vector<16x256xf32>
    %c0_5 = arith.constant 0 : index
    %c512 = arith.constant 512 : index
    %6 = vector.load %arg2[%c0_5, %c512] : memref<432x1024xbf16, #tpu.memory_space<vmem>>, vector<432x256xbf16>
    %cst_6 = arith.constant dense<0.000000e+00> : vector<16x256xf32>
    %7 = tpu.matmul %0, %6, %cst_6 {dimension_numbers = #tpu.dot_dimension_numbers<[1], [0], [0], [1], [0, 0, 1, 1], [], []>} : vector<16x432xbf16>, vector<432x256xbf16>, vector<16x256xf32> -> vector<16x256xf32>
    %8 = arith.maximumf %5, %7 : vector<16x256xf32>
    %c0_7 = arith.constant 0 : index
    %c768 = arith.constant 768 : index
    %9 = vector.load %arg2[%c0_7, %c768] : memref<432x1024xbf16, #tpu.memory_space<vmem>>, vector<432x256xbf16>
    %cst_8 = arith.constant dense<0.000000e+00> : vector<16x256xf32>
    %10 = tpu.matmul %0, %9, %cst_8 {dimension_numbers = #tpu.dot_dimension_numbers<[1], [0], [0], [1], [0, 0, 1, 1], [], []>} : vector<16x432xbf16>, vector<432x256xbf16>, vector<16x256xf32> -> vector<16x256xf32>
    %11 = arith.maximumf %8, %10 : vector<16x256xf32>
    %c0_9 = arith.constant 0 : index
    %c0_10 = arith.constant 0 : index
    %12 = vector.load %arg3[%c0_9, %c0_10] : memref<1x256xf32, #tpu.memory_space<vmem>>, vector<1x256xf32>
    %13 = vector.broadcast %12 : vector<1x256xf32> to vector<16x256xf32>
    %14 = arith.addf %11, %13 : vector<16x256xf32>
    %cst_11 = arith.constant 0.000000e+00 : f32
    %15 = vector.broadcast %cst_11 : f32 to vector<16x256xf32>
    %16 = arith.cmpf ogt, %14, %15 : vector<16x256xf32>
    %c0_12 = arith.constant 0 : index
    %c0_13 = arith.constant 0 : index
    %17 = vector.load %arg4[%c0_12, %c0_13] : memref<1x256xf32, #tpu.memory_space<vmem>>, vector<1x256xf32>
    %18 = vector.broadcast %17 : vector<1x256xf32> to vector<16x256xf32>
    %19 = arith.mulf %18, %14 : vector<16x256xf32>
    %20 = arith.select %16, %14, %19 : vector<16x256xi1>, vector<16x256xf32>
    %21 = arith.truncf %20 : vector<16x256xf32> to vector<16x256xbf16>
    %c0_14 = arith.constant 0 : index
    %c0_15 = arith.constant 0 : index
    %22 = vector.load %arg5[%c0_14, %c0_15] : memref<256x144xbf16, #tpu.memory_space<vmem>>, vector<256x144xbf16>
    %cst_16 = arith.constant dense<0.000000e+00> : vector<16x144xf32>
    %23 = tpu.matmul %21, %22, %cst_16 {dimension_numbers = #tpu.dot_dimension_numbers<[1], [0], [0], [1], [0, 0, 1, 1], [], []>} : vector<16x256xbf16>, vector<256x144xbf16>, vector<16x144xf32> -> vector<16x144xf32>
    %c0_17 = arith.constant 0 : index
    %c0_18 = arith.constant 0 : index
    %24 = vector.load %arg6[%c0_17, %c0_18] : memref<1x144xf32, #tpu.memory_space<vmem>>, vector<1x144xf32>
    %25 = vector.broadcast %24 : vector<1x144xf32> to vector<16x144xf32>
    %26 = arith.addf %23, %25 : vector<16x144xf32>
    %cst_19 = arith.constant 0.000000e+00 : f32
    %27 = vector.broadcast %cst_19 : f32 to vector<16x144xf32>
    %28 = arith.cmpf ogt, %26, %27 : vector<16x144xf32>
    %c0_20 = arith.constant 0 : index
    %c0_21 = arith.constant 0 : index
    %29 = vector.load %arg7[%c0_20, %c0_21] : memref<1x144xf32, #tpu.memory_space<vmem>>, vector<1x144xf32>
    %30 = vector.broadcast %29 : vector<1x144xf32> to vector<16x144xf32>
    %31 = arith.mulf %30, %26 : vector<16x144xf32>
    %32 = arith.select %28, %26, %31 : vector<16x144xi1>, vector<16x144xf32>
    %33 = arith.truncf %32 : vector<16x144xf32> to vector<16x144xbf16>
    %c0_22 = arith.constant 0 : index
    %c0_23 = arith.constant 0 : index
    %34 = vector.load %arg8[%c0_22, %c0_23] : memref<144x32xbf16, #tpu.memory_space<vmem>>, vector<144x32xbf16>
    %cst_24 = arith.constant dense<0.000000e+00> : vector<16x32xf32>
    %35 = tpu.matmul %33, %34, %cst_24 {dimension_numbers = #tpu.dot_dimension_numbers<[1], [0], [0], [1], [0, 0, 1, 1], [], []>} : vector<16x144xbf16>, vector<144x32xbf16>, vector<16x32xf32> -> vector<16x32xf32>
    %c0_25 = arith.constant 0 : index
    %c0_26 = arith.constant 0 : index
    %36 = vector.load %arg9[%c0_25, %c0_26] : memref<1x32xf32, #tpu.memory_space<vmem>>, vector<1x32xf32>
    %37 = vector.broadcast %36 : vector<1x32xf32> to vector<16x32xf32>
    %38 = arith.addf %35, %37 : vector<16x32xf32>
    %cst_27 = arith.constant 0.000000e+00 : f32
    %39 = vector.broadcast %cst_27 : f32 to vector<16x32xf32>
    %40 = arith.cmpf ogt, %38, %39 : vector<16x32xf32>
    %c0_28 = arith.constant 0 : index
    %c0_29 = arith.constant 0 : index
    %41 = vector.load %arg10[%c0_28, %c0_29] : memref<1x32xf32, #tpu.memory_space<vmem>>, vector<1x32xf32>
    %42 = vector.broadcast %41 : vector<1x32xf32> to vector<16x32xf32>
    %43 = arith.mulf %42, %38 : vector<16x32xf32>
    %44 = arith.select %40, %38, %43 : vector<16x32xi1>, vector<16x32xf32>
    %45 = arith.truncf %44 : vector<16x32xf32> to vector<16x32xbf16>
    %c0_30 = arith.constant 0 : index
    %c0_31 = arith.constant 0 : index
    %46 = vector.load %arg11[%c0_30, %c0_31] : memref<32x16xbf16, #tpu.memory_space<vmem>>, vector<32x16xbf16>
    %cst_32 = arith.constant dense<0.000000e+00> : vector<16x16xf32>
    %47 = tpu.matmul %45, %46, %cst_32 {dimension_numbers = #tpu.dot_dimension_numbers<[1], [0], [0], [1], [0, 0, 1, 1], [], []>} : vector<16x32xbf16>, vector<32x16xbf16>, vector<16x16xf32> -> vector<16x16xf32>
    %c0_33 = arith.constant 0 : index
    %c0_34 = arith.constant 0 : index
    %48 = vector.load %arg12[%c0_33, %c0_34] : memref<1x16xf32, #tpu.memory_space<vmem>>, vector<1x16xf32>
    %49 = vector.broadcast %48 : vector<1x16xf32> to vector<16x16xf32>
    %50 = arith.addf %47, %49 : vector<16x16xf32>
    %c0_35 = arith.constant 0 : index
    %c0_36 = arith.constant 0 : index
    %51 = vector.load %arg13[%c0_35, %c0_36] : memref<16x16xf32, #tpu.memory_space<vmem>>, vector<16x16xf32>
    tpu.vector_store %arg13[%c0_35, %c0_36], %50 {strides = array<i32>} : memref<16x16xf32, #tpu.memory_space<vmem>>, vector<16x16xf32>,
    return
  }
  func.func @transform_0(%arg0: i32) -> (i32, i32) {
    %c0_i32 = arith.constant 0 : i32
    %c0_i32_0 = arith.constant 0 : i32
    return %arg0, %c0_i32 : i32, i32
  }
  func.func @transform_1(%arg0: i32) -> (i32, i32) {
    %c0_i32 = arith.constant 0 : i32
    %c0_i32_0 = arith.constant 0 : i32
    %c0_i32_1 = arith.constant 0 : i32
    return %c0_i32, %c0_i32_0 : i32, i32
  }
  func.func @transform_2(%arg0: i32) -> (i32, i32) {
    %c0_i32 = arith.constant 0 : i32
    %c0_i32_0 = arith.constant 0 : i32
    %c0_i32_1 = arith.constant 0 : i32
    return %c0_i32, %c0_i32_0 : i32, i32
  }
  func.func @transform_3(%arg0: i32) -> (i32, i32) {
    %c0_i32 = arith.constant 0 : i32
    %c0_i32_0 = arith.constant 0 : i32
    %c0_i32_1 = arith.constant 0 : i32
    return %c0_i32, %c0_i32_0 : i32, i32
  }
  func.func @transform_4(%arg0: i32) -> (i32, i32) {
    %c0_i32 = arith.constant 0 : i32
    %c0_i32_0 = arith.constant 0 : i32
    %c0_i32_1 = arith.constant 0 : i32
    return %c0_i32, %c0_i32_0 : i32, i32
  }
  func.func @transform_5(%arg0: i32) -> (i32, i32) {
    %c0_i32 = arith.constant 0 : i32
    %c0_i32_0 = arith.constant 0 : i32
    %c0_i32_1 = arith.constant 0 : i32
    return %c0_i32, %c0_i32_0 : i32, i32
  }
  func.func @transform_6(%arg0: i32) -> (i32, i32) {
    %c0_i32 = arith.constant 0 : i32
    %c0_i32_0 = arith.constant 0 : i32
    %c0_i32_1 = arith.constant 0 : i32
    return %c0_i32, %c0_i32_0 : i32, i32
  }
  func.func @transform_7(%arg0: i32) -> (i32, i32) {
    %c0_i32 = arith.constant 0 : i32
    %c0_i32_0 = arith.constant 0 : i32
    %c0_i32_1 = arith.constant 0 : i32
    return %c0_i32, %c0_i32_0 : i32, i32
  }
  func.func @transform_8(%arg0: i32) -> (i32, i32) {
    %c0_i32 = arith.constant 0 : i32
    %c0_i32_0 = arith.constant 0 : i32
    %c0_i32_1 = arith.constant 0 : i32
    return %c0_i32, %c0_i32_0 : i32, i32
  }
  func.func @transform_9(%arg0: i32) -> (i32, i32) {
    %c0_i32 = arith.constant 0 : i32
    %c0_i32_0 = arith.constant 0 : i32
    %c0_i32_1 = arith.constant 0 : i32
    return %c0_i32, %c0_i32_0 : i32, i32
  }
  func.func @transform_10(%arg0: i32) -> (i32, i32) {
    %c0_i32 = arith.constant 0 : i32
    %c0_i32_0 = arith.constant 0 : i32
    %c0_i32_1 = arith.constant 0 : i32
    return %c0_i32, %c0_i32_0 : i32, i32
  }
  func.func @transform_11(%arg0: i32) -> (i32, i32) {
    %c0_i32 = arith.constant 0 : i32
    %c0_i32_0 = arith.constant 0 : i32
    %c0_i32_1 = arith.constant 0 : i32
    return %c0_i32, %c0_i32_0 : i32, i32
  }
  func.func @transform_12(%arg0: i32) -> (i32, i32) {
    %c0_i32 = arith.constant 0 : i32
    %c0_i32_0 = arith.constant 0 : i32
    return %arg0, %c0_i32 : i32, i32
  }
}

</mosaic_0001>

<llo_original>
// kernel: pnet_forward.1
$region0: #{pnet_forward.1}
  #allocation0 [shape = 'u32[]', space=smem, size = 0x4, offset = 0x4, fixed_abs, tag = 'smem constant byte address 0x4 - core index']
  #allocation1 [shape = 'u32[144,128]{1,0:T(1,128)}', space=vmem, size = 0x12000, scoped, tag = 'internal scratch']
  %s0 = inlined_call_operand.vmem [shape: bf16[16,432], index: 0, kind: input, shape index: {}]
  %s1 = inlined_call_operand.hbm [shape: bf16[432,1024], index: 1, kind: input, shape index: {}]
  %s2 = inlined_call_operand.vmem [shape: f32[1,256], index: 2, kind: input, shape index: {}]
  %s3 = inlined_call_operand.vmem [shape: f32[1,256], index: 3, kind: input, shape index: {}]
  %s4 = inlined_call_operand.vmem [shape: bf16[256,144], index: 4, kind: input, shape index: {}]
  %s5 = inlined_call_operand.vmem [shape: f32[1,144], index: 5, kind: input, shape index: {}]
  %s6 = inlined_call_operand.vmem [shape: f32[1,144], index: 6, kind: input, shape index: {}]
  %s7 = inlined_call_operand.vmem [shape: bf16[144,32], index: 7, kind: input, shape index: {}]
  %s8 = inlined_call_operand.vmem [shape: f32[1,32], index: 8, kind: input, shape index: {}]
  %s9 = inlined_call_operand.vmem [shape: f32[1,32], index: 9, kind: input, shape index: {}]
  %s10 = inlined_call_operand.vmem [shape: bf16[32,16], index: 10, kind: input, shape index: {}]
  %s11 = inlined_call_operand.vmem [shape: f32[1,16], index: 11, kind: input, shape index: {}]
  %s12 = inlined_call_operand.vmem [shape: f32[16,16], index: 12, kind: output, shape index: {}]
  %s13 = sld [smem:[#allocation0]]
  $region62: #{pnet_forward.1} parent=0
    _
  %s15 = ssub.s32 1, %s13
  %s16 = scalar_select 0, %s15, %s13
  $region1: #{pnet_forward.1} parent=0
    #allocation2 [shape = 'u8[884736]{0}', space=vmem, size = 0xd8000, scoped, tag = 'input window, operand 1, single buffered']
    #allocation3 [shape = 's32[1]{0}', space=sflag, size = 0x4, scoped, tag = 'scoped memory for pnet_forward.1']
    %17 = vsyncpa [#allocation3], 0
    // Predicated region
    $region2: #{pnet_forward.1} parent=1 // pred_check
      _
    $region3: #{pnet_forward.1} parent=1 // pred_check_branch
      %19 = sbr.rel (0) target = $region5
    $region4: #{pnet_forward.1} parent=1 // pred_region
      _
    $region5: #{pnet_forward.1} parent=1 // pred_fallthru
      _
    // Predicated region
    $region6: #{pnet_forward.1} parent=1 // pred_check
      _
    $region7: #{pnet_forward.1} parent=1 // pred_check_branch
      %21 = sbr.rel (0) target = $region9
    $region8: #{pnet_forward.1} parent=1 // pred_region
      %s23 = ssub.s32 27648, 27648
      %24 = vsyncadd [#allocation3], %s23
      %s25 = sshll.u32 [#allocation2], 4
      %s26 = int_to_ptr.vmem [resolvable:$true] %s25
      %31 = dma.hbm_to_vmem [thread:$0]  %s1, 27648, %s26, [#allocation3], 512, 512, 32
    $region9: #{pnet_forward.1} parent=1 // pred_fallthru
      _
    // Predicated region
    $region10: #{pnet_forward.1} parent=1 // pred_check
      _
    $region11: #{pnet_forward.1} parent=1 // pred_check_branch
      %33 = sbr.rel (0) target = $region13
    $region12: #{pnet_forward.1} parent=1 // pred_region
      _
    $region13: #{pnet_forward.1} parent=1 // pred_fallthru
      _
    // Predicated region
    $region14: #{pnet_forward.1} parent=1 // pred_check
      _
    $region15: #{pnet_forward.1} parent=1 // pred_check_branch
      %35 = sbr.rel (0) target = $region17
    $region16: #{pnet_forward.1} parent=1 // pred_region
      _
    $region17: #{pnet_forward.1} parent=1 // pred_fallthru
      _
    // Predicated region
    $region18: #{pnet_forward.1} parent=1 // pred_check
      _
    $region19: #{pnet_forward.1} parent=1 // pred_check_branch
      %37 = sbr.rel (0) target = $region21
    $region20: #{pnet_forward.1} parent=1 // pred_region
      _
    $region21: #{pnet_forward.1} parent=1 // pred_fallthru
      _
    // Predicated region
    $region22: #{pnet_forward.1} parent=1 // pred_check
      _
    $region23: #{pnet_forward.1} parent=1 // pred_check_branch
      %39 = sbr.rel (0) target = $region25
    $region24: #{pnet_forward.1} parent=1 // pred_region
      _
    $region25: #{pnet_forward.1} parent=1 // pred_fallthru
      _
    // Predicated region
    $region26: #{pnet_forward.1} parent=1 // pred_check
      _
    $region27: #{pnet_forward.1} parent=1 // pred_check_branch
      %41 = sbr.rel (0) target = $region29
    $region28: #{pnet_forward.1} parent=1 // pred_region
      _
    $region29: #{pnet_forward.1} parent=1 // pred_fallthru
      _
    // Predicated region
    $region30: #{pnet_forward.1} parent=1 // pred_check
      _
    $region31: #{pnet_forward.1} parent=1 // pred_check_branch
      %43 = sbr.rel (0) target = $region33
    $region32: #{pnet_forward.1} parent=1 // pred_region
      _
    $region33: #{pnet_forward.1} parent=1 // pred_fallthru
      _
    // Predicated region
    $region34: #{pnet_forward.1} parent=1 // pred_check
      _
    $region35: #{pnet_forward.1} parent=1 // pred_check_branch
      %45 = sbr.rel (0) target = $region37
    $region36: #{pnet_forward.1} parent=1 // pred_region
      _
    $region37: #{pnet_forward.1} parent=1 // pred_fallthru
      _
    // Predicated region
    $region38: #{pnet_forward.1} parent=1 // pred_check
      _
    $region39: #{pnet_forward.1} parent=1 // pred_check_branch
      %47 = sbr.rel (0) target = $region41
    $region40: #{pnet_forward.1} parent=1 // pred_region
      _
    $region41: #{pnet_forward.1} parent=1 // pred_fallthru
      _
    // Predicated region
    $region42: #{pnet_forward.1} parent=1 // pred_check
      _
    $region43: #{pnet_forward.1} parent=1 // pred_check_branch
      %49 = sbr.rel (0) target = $region45
    $region44: #{pnet_forward.1} parent=1 // pred_region
      _
    $region45: #{pnet_forward.1} parent=1 // pred_fallthru
      _
    // Predicated region
    $region46: #{pnet_forward.1} parent=1 // pred_check
      _
    $region47: #{pnet_forward.1} parent=1 // pred_check_branch
      %51 = sbr.rel (0) target = $region49
    $region48: #{pnet_forward.1} parent=1 // pred_region
      _
    $region49: #{pnet_forward.1} parent=1 // pred_fallthru
      _
    // Predicated region
    $region50: #{pnet_forward.1} parent=1 // pred_check
      _
    $region51: #{pnet_forward.1} parent=1 // pred_check_branch
      %53 = sbr.rel (0) target = $region53
    $region52: #{pnet_forward.1} parent=1 // pred_region
      %54 = dma.done [#allocation3], 27648
    $region53: #{pnet_forward.1} parent=1 // pred_fallthru
      _
    %v56 = vld [vmem:[%s0] sm:$0xff]
    %v57 = vld [vmem:[%s0 + $0x8] sm:$0xff]
    %v58 = vld [vmem:[%s0 + $0x10] sm:$0xff]
    %v59 = vld [vmem:[%s0 + $0x18] sm:$0xff]
    %v60 = vld [vmem:[#allocation2] sm:$0xff]
    %v61 = vld [vmem:[#allocation2 + $0x20] sm:$0xff]
    %v62 = vld [vmem:[#allocation2 + $0x40] sm:$0xff]
    %v63 = vld [vmem:[#allocation2 + $0x60] sm:$0xff]
    %v64 = vld [vmem:[#allocation2 + $0x80] sm:$0xff]
    %v65 = vld [vmem:[#allocation2 + $0xa0] sm:$0xff]
    %v66 = vld [vmem:[#allocation2 + $0xc0] sm:$0xff]
    %v67 = vld [vmem:[#allocation2 + $0xe0] sm:$0xff]
    %v68 = vld [vmem:[#allocation2 + $0x100] sm:$0xff]
    %v69 = vld [vmem:[#allocation2 + $0x120] sm:$0xff]
    %v70 = vld [vmem:[#allocation2 + $0x140] sm:$0xff]
    %v71 = vld [vmem:[#allocation2 + $0x160] sm:$0xff]
    %v72 = vld [vmem:[#allocation2 + $0x180] sm:$0xff]
    %v73 = vld [vmem:[#allocation2 + $0x1a0] sm:$0xff]
    %v74 = vld [vmem:[#allocation2 + $0x1c0] sm:$0xff]
    %v75 = vld [vmem:[#allocation2 + $0x1e0] sm:$0xff]
    %v76 = vld [vmem:[#allocation2 + $0x200] sm:$0xff]
    %v77 = vld [vmem:[#allocation2 + $0x220] sm:$0xff]
    %v78 = vld [vmem:[#allocation2 + $0x240] sm:$0xff]
    %v79 = vld [vmem:[#allocation2 + $0x260] sm:$0xff]
    %v80 = vld [vmem:[#allocation2 + $0x280] sm:$0xff]
    %v81 = vld [vmem:[#allocation2 + $0x2a0] sm:$0xff]
    %v82 = vld [vmem:[#allocation2 + $0x2c0] sm:$0xff]
    %v83 = vld [vmem:[#allocation2 + $0x2e0] sm:$0xff]
    %v84 = vld [vmem:[#allocation2 + $0x300] sm:$0xff]
    %v85 = vld [vmem:[#allocation2 + $0x320] sm:$0xff]
    %v86 = vld [vmem:[#allocation2 + $0x340] sm:$0xff]
    %v87 = vld [vmem:[#allocation2 + $0x360] sm:$0xff]
    %v88 = vld [vmem:[#allocation2 + $0x380] sm:$0xff]
    %v89 = vld [vmem:[#allocation2 + $0x3a0] sm:$0xff]
    %v90 = vld [vmem:[#allocation2 + $0x3c0] sm:$0xff]
    %v91 = vld [vmem:[#allocation2 + $0x3e0] sm:$0xff]
    %v92 = vld [vmem:[#allocation2 + $0x400] sm:$0xff]
    %v93 = vld [vmem:[#allocation2 + $0x420] sm:$0xff]
    %v94 = vld [vmem:[#allocation2 + $0x440] sm:$0xff]
    %v95 = vld [vmem:[#allocation2 + $0x460] sm:$0xff]
    %v96 = vld [vmem:[#allocation2 + $0x480] sm:$0xff]
    %v97 = vld [vmem:[#allocation2 + $0x4a0] sm:$0xff]
    %v98 = vld [vmem:[#allocation2 + $0x4c0] sm:$0xff]
    %v99 = vld [vmem:[#allocation2 + $0x4e0] sm:$0xff]
    %v100 = vld [vmem:[#allocation2 + $0x500] sm:$0xff]
    %v101 = vld [vmem:[#allocation2 + $0x520] sm:$0xff]
    %v102 = vld [vmem:[#allocation2 + $0x540] sm:$0xff]
    %v103 = vld [vmem:[#allocation2 + $0x560] sm:$0xff]
    %v104 = vld [vmem:[#allocation2 + $0x580] sm:$0xff]
    %v105 = vld [vmem:[#allocation2 + $0x5a0] sm:$0xff]
    %v106 = vld [vmem:[#allocation2 + $0x5c0] sm:$0xff]
    %v107 = vld [vmem:[#allocation2 + $0x5e0] sm:$0xff]
    %v108 = vld [vmem:[#allocation2 + $0x600] sm:$0xff]
    %v109 = vld [vmem:[#allocation2 + $0x620] sm:$0xff]
    %v110 = vld [vmem:[#allocation2 + $0x640] sm:$0xff]
    %v111 = vld [vmem:[#allocation2 + $0x660] sm:$0xff]
    %v112 = vld [vmem:[#allocation2 + $0x680] sm:$0xff]
    %v113 = vld [vmem:[#allocation2 + $0x6a0] sm:$0xff]
    %v118 = vunpack.c.l.b16 %v56
    %v119 = vunpack.c.h.b16 %v56
    %v120 = vunpack.c.l.b16 %v57
    %v121 = vunpack.c.h.b16 %v57
    %v122 = vunpack.c.l.b16 %v58
    %v123 = vunpack.c.h.b16 %v58
    %v124 = vunpack.c.l.b16 %v59
    %v125 = vunpack.c.h.b16 %v59
    %v126 = vpack.c.b16 %v122, %v118
    %v127 = vpack.c.b16 %v123, %v119
    %v128 = vpack.c.b16 %v124, %v120
    %v129 = vpack.c.b16 %v125, %v121
    %v187 = vunpack.c.l.b16 %v60
    %v188 = vunpack.c.h.b16 %v60
    %v189 = vunpack.c.l.b16 %v61
    %v190 = vunpack.c.h.b16 %v61
    %v191 = vunpack.c.l.b16 %v62
    %v192 = vunpack.c.h.b16 %v62
    %v193 = vunpack.c.l.b16 %v63
    %v194 = vunpack.c.h.b16 %v63
    %v195 = vunpack.c.l.b16 %v64
    %v196 = vunpack.c.h.b16 %v64
    %v197 = vunpack.c.l.b16 %v65
    %v198 = vunpack.c.h.b16 %v65
    %v199 = vunpack.c.l.b16 %v66
    %v200 = vunpack.c.h.b16 %v66
    %v201 = vunpack.c.l.b16 %v67
    %v202 = vunpack.c.h.b16 %v67
    %v203 = vunpack.c.l.b16 %v68
    %v204 = vunpack.c.h.b16 %v68
    %v205 = vunpack.c.l.b16 %v69
    %v206 = vunpack.c.h.b16 %v69
    %v207 = vunpack.c.l.b16 %v70
    %v208 = vunpack.c.h.b16 %v70
    %v209 = vunpack.c.l.b16 %v71
    %v210 = vunpack.c.h.b16 %v71
    %v211 = vunpack.c.l.b16 %v72
    %v212 = vunpack.c.h.b16 %v72
    %v213 = vunpack.c.l.b16 %v73
    %v214 = vunpack.c.h.b16 %v73
    %v215 = vunpack.c.l.b16 %v74
    %v216 = vunpack.c.h.b16 %v74
    %v217 = vunpack.c.l.b16 %v75
    %v218 = vunpack.c.h.b16 %v75
    %v219 = vunpack.c.l.b16 %v76
    %v220 = vunpack.c.h.b16 %v76
    %v221 = vunpack.c.l.b16 %v77
    %v222 = vunpack.c.h.b16 %v77
    %v223 = vunpack.c.l.b16 %v78
    %v224 = vunpack.c.h.b16 %v78
    %v225 = vunpack.c.l.b16 %v79
    %v226 = vunpack.c.h.b16 %v79
    %v227 = vunpack.c.l.b16 %v80
    %v228 = vunpack.c.h.b16 %v80
    %v229 = vunpack.c.l.b16 %v81
    %v230 = vunpack.c.h.b16 %v81
    %v231 = vunpack.c.l.b16 %v82
    %v232 = vunpack.c.h.b16 %v82
    %v233 = vunpack.c.l.b16 %v83
    %v234 = vunpack.c.h.b16 %v83
    %v235 = vunpack.c.l.b16 %v84
    %v236 = vunpack.c.h.b16 %v84
    %v237 = vunpack.c.l.b16 %v85
    %v238 = vunpack.c.h.b16 %v85
    %v239 = vunpack.c.l.b16 %v86
    %v240 = vunpack.c.h.b16 %v86
    %v241 = vunpack.c.l.b16 %v87
    %v242 = vunpack.c.h.b16 %v87
    %v243 = vunpack.c.l.b16 %v88
    %v244 = vunpack.c.h.b16 %v88
    %v245 = vunpack.c.l.b16 %v89
    %v246 = vunpack.c.h.b16 %v89
    %v247 = vunpack.c.l.b16 %v90
    %v248 = vunpack.c.h.b16 %v90
    %v249 = vunpack.c.l.b16 %v91
    %v250 = vunpack.c.h.b16 %v91
    %v251 = vunpack.c.l.b16 %v92
    %v252 = vunpack.c.h.b16 %v92
    %v253 = vunpack.c.l.b16 %v93
    %v254 = vunpack.c.h.b16 %v93
    %v255 = vunpack.c.l.b16 %v94
    %v256 = vunpack.c.h.b16 %v94
    %v257 = vunpack.c.l.b16 %v95
    %v258 = vunpack.c.h.b16 %v95
    %v259 = vunpack.c.l.b16 %v96
    %v260 = vunpack.c.h.b16 %v96
    %v261 = vunpack.c.l.b16 %v97
    %v262 = vunpack.c.h.b16 %v97
    %v263 = vunpack.c.l.b16 %v98
    %v264 = vunpack.c.h.b16 %v98
    %v265 = vunpack.c.l.b16 %v99
    %v266 = vunpack.c.h.b16 %v99
    %v267 = vunpack.c.l.b16 %v100
    %v268 = vunpack.c.h.b16 %v100
    %v269 = vunpack.c.l.b16 %v101
    %v270 = vunpack.c.h.b16 %v101
    %v271 = vunpack.c.l.b16 %v102
    %v272 = vunpack.c.h.b16 %v102
    %v273 = vunpack.c.l.b16 %v103
    %v274 = vunpack.c.h.b16 %v103
    %v275 = vunpack.c.l.b16 %v104
    %v276 = vunpack.c.h.b16 %v104
    %v277 = vunpack.c.l.b16 %v105
    %v278 = vunpack.c.h.b16 %v105
    %v279 = vunpack.c.l.b16 %v106
    %v280 = vunpack.c.h.b16 %v106
    %v281 = vunpack.c.l.b16 %v107
    %v282 = vunpack.c.h.b16 %v107
    %v283 = vunpack.c.l.b16 %v108
    %v284 = vunpack.c.h.b16 %v108
    %v285 = vunpack.c.l.b16 %v109
    %v286 = vunpack.c.h.b16 %v109
    %v287 = vunpack.c.l.b16 %v110
    %v288 = vunpack.c.h.b16 %v110
    %v289 = vunpack.c.l.b16 %v111
    %v290 = vunpack.c.h.b16 %v111
    %v291 = vunpack.c.l.b16 %v112
    %v292 = vunpack.c.h.b16 %v112
    %v293 = vunpack.c.l.b16 %v113
    %v294 = vunpack.c.h.b16 %v113
    %v295 = vpack.c.b16 %v189, %v187
    %v296 = vpack.c.b16 %v190, %v188
    %v297 = vpack.c.b16 %v193, %v191
    %v298 = vpack.c.b16 %v194, %v192
    %v299 = vpack.c.b16 %v197, %v195
    %v300 = vpack.c.b16 %v198, %v196
    %v301 = vpack.c.b16 %v201, %v199
    %v302 = vpack.c.b16 %v202, %v200
    %v303 = vpack.c.b16 %v205, %v203
    %v304 = vpack.c.b16 %v206, %v204
    %v305 = vpack.c.b16 %v209, %v207
    %v306 = vpack.c.b16 %v210, %v208
    %v307 = vpack.c.b16 %v213, %v211
    %v308 = vpack.c.b16 %v214, %v212
    %v309 = vpack.c.b16 %v217, %v215
    %v310 = vpack.c.b16 %v218, %v216
    %v311 = vpack.c.b16 %v221, %v219
    %v312 = vpack.c.b16 %v222, %v220
    %v313 = vpack.c.b16 %v225, %v223
    %v314 = vpack.c.b16 %v226, %v224
    %v315 = vpack.c.b16 %v229, %v227
    %v316 = vpack.c.b16 %v230, %v228
    %v317 = vpack.c.b16 %v233, %v231
    %v318 = vpack.c.b16 %v234, %v232
    %v319 = vpack.c.b16 %v237, %v235
    %v320 = vpack.c.b16 %v238, %v236
    %v321 = vpack.c.b16 %v241, %v239
    %v322 = vpack.c.b16 %v242, %v240
    %v323 = vpack.c.b16 %v245, %v243
    %v324 = vpack.c.b16 %v246, %v244
    %v325 = vpack.c.b16 %v249, %v247
    %v326 = vpack.c.b16 %v250, %v248
    %v327 = vpack.c.b16 %v253, %v251
    %v328 = vpack.c.b16 %v254, %v252
    %v329 = vpack.c.b16 %v257, %v255
    %v330 = vpack.c.b16 %v258, %v256
    %v331 = vpack.c.b16 %v261, %v259
    %v332 = vpack.c.b16 %v262, %v260
    %v333 = vpack.c.b16 %v265, %v263
    %v334 = vpack.c.b16 %v266, %v264
    %v335 = vpack.c.b16 %v269, %v267
    %v336 = vpack.c.b16 %v270, %v268
    %v337 = vpack.c.b16 %v273, %v271
    %v338 = vpack.c.b16 %v274, %v272
    %v339 = vpack.c.b16 %v277, %v275
    %v340 = vpack.c.b16 %v278, %v276
    %v341 = vpack.c.b16 %v281, %v279
    %v342 = vpack.c.b16 %v282, %v280
    %v343 = vpack.c.b16 %v285, %v283
    %v344 = vpack.c.b16 %v286, %v284
    %v345 = vpack.c.b16 %v289, %v287
    %v346 = vpack.c.b16 %v290, %v288
    %v347 = vpack.c.b16 %v293, %v291
    %v348 = vpack.c.b16 %v294, %v292
    %vm403 = vcmask 392192
    %v405 = vsel %vm403, %v129, 0
    %407 = vmatprep.subr.bf16.mxu0 %v296
    %408 = vmatpush1.bf16.msra.mxu0 %v295
    %409 = vmatprep.subr.bf16.mxu0 %v298
    %410 = vmatpush1.bf16.msra.mxu0 %v297
    %411 = vmatprep.subr.bf16.mxu0 %v300
    %412 = vmatpush1.bf16.msra.mxu0 %v299
    %413 = vmatprep.subr.bf16.mxu0 %v302
    %414 = vmatpush1.bf16.msra.mxu0 %v301
    %415 = vmatprep.subr.bf16.mxu0 %v304
    %416 = vmatpush1.bf16.msra.mxu0 %v303
    %417 = vmatprep.subr.bf16.mxu0 %v306
    %418 = vmatpush1.bf16.msra.mxu0 %v305
    %419 = vmatprep.subr.bf16.mxu0 %v308
    %420 = vmatpush1.bf16.msra.mxu0 %v307
    %421 = vmatprep.subr.bf16.mxu0 %v310
    %422 = vmatpush1.bf16.msra.mxu0 %v309
    %423 = vmatprep.subr.bf16.mxu0 %v312
    %424 = vmatpush1.bf16.msra.mxu0 %v311
    %425 = vmatprep.subr.bf16.mxu0 %v314
    %426 = vmatpush1.bf16.msra.mxu0 %v313
    %427 = vmatprep.subr.bf16.mxu0 %v316
    %428 = vmatpush1.bf16.msra.mxu0 %v315
    %429 = vmatprep.subr.bf16.mxu0 %v318
    %430 = vmatpush1.bf16.msra.mxu0 %v317
    %431 = vmatprep.subr.bf16.mxu0 %v320
    %432 = vmatpush1.bf16.msra.mxu0 %v319
    %433 = vmatprep.subr.bf16.mxu0 %v322
    %434 = vmatpush1.bf16.msra.mxu0 %v321
    %435 = vmatprep.subr.bf16.mxu0 %v324
    %436 = vmatpush1.bf16.msra.mxu0 %v323
    %437 = vmatprep.subr.bf16.mxu0 %v326
    %438 = vmatpush1.bf16.msra.mxu0 %v325
    %439 = vmatprep.mubr.bf16.mxu0 %v127
    %440 = vmatmul.mubr.bf16.gmra.mrb[0].mxu0 %v126
    %v441 = vpop.f32.mrb[0].mxu0
    %v442 = vadd.f32 0.0, %v441
    %v443 = vpop.f32.mrb[0].mxu0
    %v444 = vadd.f32 0.0, %v443
    %v445 = vpop.f32.mrb[0].mxu0
    %v446 = vadd.f32 0.0, %v445
    %v447 = vpop.f32.mrb[0].mxu0
    %v448 = vadd.f32 0.0, %v447
    %449 = vdwg.mxu0
    %450 = vmatprep.subr.bf16.mxu0 %v328
    %451 = vmatpush1.bf16.msra.mxu0 %v327
    %452 = vmatprep.subr.bf16.mxu0 %v330
    %453 = vmatpush1.bf16.msra.mxu0 %v329
    %454 = vmatprep.subr.bf16.mxu0 %v332
    %455 = vmatpush1.bf16.msra.mxu0 %v331
    %456 = vmatprep.subr.bf16.mxu0 %v334
    %457 = vmatpush1.bf16.msra.mxu0 %v333
    %458 = vmatprep.subr.bf16.mxu0 %v336
    %459 = vmatpush1.bf16.msra.mxu0 %v335
    %460 = vmatprep.subr.bf16.mxu0 %v338
    %461 = vmatpush1.bf16.msra.mxu0 %v337
    %462 = vmatprep.subr.bf16.mxu0 %v340
    %463 = vmatpush1.bf16.msra.mxu0 %v339
    %464 = vmatprep.subr.bf16.mxu0 %v342
    %465 = vmatpush1.bf16.msra.mxu0 %v341
    %466 = vmatprep.subr.bf16.mxu0 %v344
    %467 = vmatpush1.bf16.msra.mxu0 %v343
    %468 = vmatprep.subr.bf16.mxu0 %v346
    %469 = vmatpush1.bf16.msra.mxu0 %v345
    %470 = vmatprep.subr.bf16.mxu0 %v348
    %471 = vmatpush1.bf16.msra.mxu0 %v347
    %472 = vmatprep.subr.bf16.mxu0 0
    %473 = vmatpush1.bf16.msra.mxu0 0
    %474 = vmatprep.subr.bf16.mxu0 0
    %475 = vmatpush1.bf16.msra.mxu0 0
    %476 = vmatprep.subr.bf16.mxu0 0
    %477 = vmatpush1.bf16.msra.mxu0 0
    %478 = vmatprep.subr.bf16.mxu0 0
    %479 = vmatpush1.bf16.msra.mxu0 0
    %480 = vmatprep.subr.bf16.mxu0 0
    %481 = vmatpush1.bf16.msra.mxu0 0
    %482 = vmatprep.mubr.bf16.mxu0 %v405
    %483 = vmatmul.mubr.bf16.gmra.mrb[0].mxu0 %v128
    %v484 = vpop.f32.mrb[0].mxu0
    %v485 = vadd.f32 %v442, %v484
    %v486 = vpop.f32.mrb[0].mxu0
    %v487 = vadd.f32 %v444, %v486
    %v488 = vpop.f32.mrb[0].mxu0
    %v489 = vadd.f32 %v446, %v488
    %v490 = vpop.f32.mrb[0].mxu0
    %v491 = vadd.f32 %v448, %v490
    %492 = vdwg.mxu0
    %v493 = vld [vmem:[#allocation2 + $0x8] sm:$0xff]
    %v494 = vld [vmem:[#allocation2 + $0x28] sm:$0xff]
    %v495 = vld [vmem:[#allocation2 + $0x48] sm:$0xff]
    %v496 = vld [vmem:[#allocation2 + $0x68] sm:$0xff]
    %v497 = vld [vmem:[#allocation2 + $0x88] sm:$0xff]
    %v498 = vld [vmem:[#allocation2 + $0xa8] sm:$0xff]
    %v499 = vld [vmem:[#allocation2 + $0xc8] sm:$0xff]
    %v500 = vld [vmem:[#allocation2 + $0xe8] sm:$0xff]
    %v501 = vld [vmem:[#allocation2 + $0x108] sm:$0xff]
    %v502 = vld [vmem:[#allocation2 + $0x128] sm:$0xff]
    %v503 = vld [vmem:[#allocation2 + $0x148] sm:$0xff]
    %v504 = vld [vmem:[#allocation2 + $0x168] sm:$0xff]
    %v505 = vld [vmem:[#allocation2 + $0x188] sm:$0xff]
    %v506 = vld [vmem:[#allocation2 + $0x1a8] sm:$0xff]
    %v507 = vld [vmem:[#allocation2 + $0x1c8] sm:$0xff]
    %v508 = vld [vmem:[#allocation2 + $0x1e8] sm:$0xff]
    %v509 = vld [vmem:[#allocation2 + $0x208] sm:$0xff]
    %v510 = vld [vmem:[#allocation2 + $0x228] sm:$0xff]
    %v511 = vld [vmem:[#allocation2 + $0x248] sm:$0xff]
    %v512 = vld [vmem:[#allocation2 + $0x268] sm:$0xff]
    %v513 = vld [vmem:[#allocation2 + $0x288] sm:$0xff]
    %v514 = vld [vmem:[#allocation2 + $0x2a8] sm:$0xff]
    %v515 = vld [vmem:[#allocation2 + $0x2c8] sm:$0xff]
    %v516 = vld [vmem:[#allocation2 + $0x2e8] sm:$0xff]
    %v517 = vld [vmem:[#allocation2 + $0x308] sm:$0xff]
    %v518 = vld [vmem:[#allocation2 + $0x328] sm:$0xff]
    %v519 = vld [vmem:[#allocation2 + $0x348] sm:$0xff]
    %v520 = vld [vmem:[#allocation2 + $0x368] sm:$0xff]
    %v521 = vld [vmem:[#allocation2 + $0x388] sm:$0xff]
    %v522 = vld [vmem:[#allocation2 + $0x3a8] sm:$0xff]
    %v523 = vld [vmem:[#allocation2 + $0x3c8] sm:$0xff]
    %v524 = vld [vmem:[#allocation2 + $0x3e8] sm:$0xff]
    %v525 = vld [vmem:[#allocation2 + $0x408] sm:$0xff]
    %v526 = vld [vmem:[#allocation2 + $0x428] sm:$0xff]
    %v527 = vld [vmem:[#allocation2 + $0x448] sm:$0xff]
    %v528 = vld [vmem:[#allocation2 + $0x468] sm:$0xff]
    %v529 = vld [vmem:[#allocation2 + $0x488] sm:$0xff]
    %v530 = vld [vmem:[#allocation2 + $0x4a8] sm:$0xff]
    %v531 = vld [vmem:[#allocation2 + $0x4c8] sm:$0xff]
    %v532 = vld [vmem:[#allocation2 + $0x4e8] sm:$0xff]
    %v533 = vld [vmem:[#allocation2 + $0x508] sm:$0xff]
    %v534 = vld [vmem:[#allocation2 + $0x528] sm:$0xff]
    %v535 = vld [vmem:[#allocation2 + $0x548] sm:$0xff]
    %v536 = vld [vmem:[#allocation2 + $0x568] sm:$0xff]
    %v537 = vld [vmem:[#allocation2 + $0x588] sm:$0xff]
    %v538 = vld [vmem:[#allocation2 + $0x5a8] sm:$0xff]
    %v539 = vld [vmem:[#allocation2 + $0x5c8] sm:$0xff]
    %v540 = vld [vmem:[#allocation2 + $0x5e8] sm:$0xff]
    %v541 = vld [vmem:[#allocation2 + $0x608] sm:$0xff]
    %v542 = vld [vmem:[#allocation2 + $0x628] sm:$0xff]
    %v543 = vld [vmem:[#allocation2 + $0x648] sm:$0xff]
    %v544 = vld [vmem:[#allocation2 + $0x668] sm:$0xff]
    %v545 = vld [vmem:[#allocation2 + $0x688] sm:$0xff]
    %v546 = vld [vmem:[#allocation2 + $0x6a8] sm:$0xff]
    %v601 = vunpack.c.l.b16 %v493
    %v602 = vunpack.c.h.b16 %v493
    %v603 = vunpack.c.l.b16 %v494
    %v604 = vunpack.c.h.b16 %v494
    %v605 = vunpack.c.l.b16 %v495
    %v606 = vunpack.c.h.b16 %v495
    %v607 = vunpack.c.l.b16 %v496
    %v608 = vunpack.c.h.b16 %v496
    %v609 = vunpack.c.l.b16 %v497
    %v610 = vunpack.c.h.b16 %v497
    %v611 = vunpack.c.l.b16 %v498
    %v612 = vunpack.c.h.b16 %v498
    %v613 = vunpack.c.l.b16 %v499
    %v614 = vunpack.c.h.b16 %v499
    %v615 = vunpack.c.l.b16 %v500
    %v616 = vunpack.c.h.b16 %v500
    %v617 = vunpack.c.l.b16 %v501
    %v618 = vunpack.c.h.b16 %v501
    %v619 = vunpack.c.l.b16 %v502
    %v620 = vunpack.c.h.b16 %v502
    %v621 = vunpack.c.l.b16 %v503
    %v622 = vunpack.c.h.b16 %v503
    %v623 = vunpack.c.l.b16 %v504
    %v624 = vunpack.c.h.b16 %v504
    %v625 = vunpack.c.l.b16 %v505
    %v626 = vunpack.c.h.b16 %v505
    %v627 = vunpack.c.l.b16 %v506
    %v628 = vunpack.c.h.b16 %v506
    %v629 = vunpack.c.l.b16 %v507
    %v630 = vunpack.c.h.b16 %v507
    %v631 = vunpack.c.l.b16 %v508
    %v632 = vunpack.c.h.b16 %v508
    %v633 = vunpack.c.l.b16 %v509
    %v634 = vunpack.c.h.b16 %v509
    %v635 = vunpack.c.l.b16 %v510
    %v636 = vunpack.c.h.b16 %v510
    %v637 = vunpack.c.l.b16 %v511
    %v638 = vunpack.c.h.b16 %v511
    %v639 = vunpack.c.l.b16 %v512
    %v640 = vunpack.c.h.b16 %v512
    %v641 = vunpack.c.l.b16 %v513
    %v642 = vunpack.c.h.b16 %v513
    %v643 = vunpack.c.l.b16 %v514
    %v644 = vunpack.c.h.b16 %v514
    %v645 = vunpack.c.l.b16 %v515
    %v646 = vunpack.c.h.b16 %v515
    %v647 = vunpack.c.l.b16 %v516
    %v648 = vunpack.c.h.b16 %v516
    %v649 = vunpack.c.l.b16 %v517
    %v650 = vunpack.c.h.b16 %v517
    %v651 = vunpack.c.l.b16 %v518
    %v652 = vunpack.c.h.b16 %v518
    %v653 = vunpack.c.l.b16 %v519
    %v654 = vunpack.c.h.b16 %v519
    %v655 = vunpack.c.l.b16 %v520
    %v656 = vunpack.c.h.b16 %v520
    %v657 = vunpack.c.l.b16 %v521
    %v658 = vunpack.c.h.b16 %v521
    %v659 = vunpack.c.l.b16 %v522
    %v660 = vunpack.c.h.b16 %v522
    %v661 = vunpack.c.l.b16 %v523
    %v662 = vunpack.c.h.b16 %v523
    %v663 = vunpack.c.l.b16 %v524
    %v664 = vunpack.c.h.b16 %v524
    %v665 = vunpack.c.l.b16 %v525
    %v666 = vunpack.c.h.b16 %v525
    %v667 = vunpack.c.l.b16 %v526
    %v668 = vunpack.c.h.b16 %v526
    %v669 = vunpack.c.l.b16 %v527
    %v670 = vunpack.c.h.b16 %v527
    %v671 = vunpack.c.l.b16 %v528
    %v672 = vunpack.c.h.b16 %v528
    %v673 = vunpack.c.l.b16 %v529
    %v674 = vunpack.c.h.b16 %v529
    %v675 = vunpack.c.l.b16 %v530
    %v676 = vunpack.c.h.b16 %v530
    %v677 = vunpack.c.l.b16 %v531
    %v678 = vunpack.c.h.b16 %v531
    %v679 = vunpack.c.l.b16 %v532
    %v680 = vunpack.c.h.b16 %v532
    %v681 = vunpack.c.l.b16 %v533
    %v682 = vunpack.c.h.b16 %v533
    %v683 = vunpack.c.l.b16 %v534
    %v684 = vunpack.c.h.b16 %v534
    %v685 = vunpack.c.l.b16 %v535
    %v686 = vunpack.c.h.b16 %v535
    %v687 = vunpack.c.l.b16 %v536
    %v688 = vunpack.c.h.b16 %v536
    %v689 = vunpack.c.l.b16 %v537
    %v690 = vunpack.c.h.b16 %v537
    %v691 = vunpack.c.l.b16 %v538
    %v692 = vunpack.c.h.b16 %v538
    %v693 = vunpack.c.l.b16 %v539
    %v694 = vunpack.c.h.b16 %v539
    %v695 = vunpack.c.l.b16 %v540
    %v696 = vunpack.c.h.b16 %v540
    %v697 = vunpack.c.l.b16 %v541
    %v698 = vunpack.c.h.b16 %v541
    %v699 = vunpack.c.l.b16 %v542
    %v700 = vunpack.c.h.b16 %v542
    %v701 = vunpack.c.l.b16 %v543
    %v702 = vunpack.c.h.b16 %v543
    %v703 = vunpack.c.l.b16 %v544
    %v704 = vunpack.c.h.b16 %v544
    %v705 = vunpack.c.l.b16 %v545
    %v706 = vunpack.c.h.b16 %v545
    %v707 = vunpack.c.l.b16 %v546
    %v708 = vunpack.c.h.b16 %v546
    %v709 = vpack.c.b16 %v603, %v601
    %v710 = vpack.c.b16 %v604, %v602
    %v711 = vpack.c.b16 %v607, %v605
    %v712 = vpack.c.b16 %v608, %v606
    %v713 = vpack.c.b16 %v611, %v609
    %v714 = vpack.c.b16 %v612, %v610
    %v715 = vpack.c.b16 %v615, %v613
    %v716 = vpack.c.b16 %v616, %v614
    %v717 = vpack.c.b16 %v619, %v617
    %v718 = vpack.c.b16 %v620, %v618
    %v719 = vpack.c.b16 %v623, %v621
    %v720 = vpack.c.b16 %v624, %v622
    %v721 = vpack.c.b16 %v627, %v625
    %v722 = vpack.c.b16 %v628, %v626
    %v723 = vpack.c.b16 %v631, %v629
    %v724 = vpack.c.b16 %v632, %v630
    %v725 = vpack.c.b16 %v635, %v633
    %v726 = vpack.c.b16 %v636, %v634
    %v727 = vpack.c.b16 %v639, %v637
    %v728 = vpack.c.b16 %v640, %v638
    %v729 = vpack.c.b16 %v643, %v641
    %v730 = vpack.c.b16 %v644, %v642
    %v731 = vpack.c.b16 %v647, %v645
    %v732 = vpack.c.b16 %v648, %v646
    %v733 = vpack.c.b16 %v651, %v649
    %v734 = vpack.c.b16 %v652, %v650
    %v735 = vpack.c.b16 %v655, %v653
    %v736 = vpack.c.b16 %v656, %v654
    %v737 = vpack.c.b16 %v659, %v657
    %v738 = vpack.c.b16 %v660, %v658
    %v739 = vpack.c.b16 %v663, %v661
    %v740 = vpack.c.b16 %v664, %v662
    %v741 = vpack.c.b16 %v667, %v665
    %v742 = vpack.c.b16 %v668, %v666
    %v743 = vpack.c.b16 %v671, %v669
    %v744 = vpack.c.b16 %v672, %v670
    %v745 = vpack.c.b16 %v675, %v673
    %v746 = vpack.c.b16 %v676, %v674
    %v747 = vpack.c.b16 %v679, %v677
    %v748 = vpack.c.b16 %v680, %v678
    %v749 = vpack.c.b16 %v683, %v681
    %v750 = vpack.c.b16 %v684, %v682
    %v751 = vpack.c.b16 %v687, %v685
    %v752 = vpack.c.b16 %v688, %v686
    %v753 = vpack.c.b16 %v691, %v689
    %v754 = vpack.c.b16 %v692, %v690
    %v755 = vpack.c.b16 %v695, %v693
    %v756 = vpack.c.b16 %v696, %v694
    %v757 = vpack.c.b16 %v699, %v697
    %v758 = vpack.c.b16 %v700, %v698
    %v759 = vpack.c.b16 %v703, %v701
    %v760 = vpack.c.b16 %v704, %v702
    %v761 = vpack.c.b16 %v707, %v705
    %v762 = vpack.c.b16 %v708, %v706
    %817 = vmatprep.subr.bf16.mxu0 %v710
    %818 = vmatpush1.bf16.msra.mxu0 %v709
    %819 = vmatprep.subr.bf16.mxu0 %v712
    %820 = vmatpush1.bf16.msra.mxu0 %v711
    %821 = vmatprep.subr.bf16.mxu0 %v714
    %822 = vmatpush1.bf16.msra.mxu0 %v713
    %823 = vmatprep.subr.bf16.mxu0 %v716
    %824 = vmatpush1.bf16.msra.mxu0 %v715
    %825 = vmatprep.subr.bf16.mxu0 %v718
    %826 = vmatpush1.bf16.msra.mxu0 %v717
    %827 = vmatprep.subr.bf16.mxu0 %v720
    %828 = vmatpush1.bf16.msra.mxu0 %v719
    %829 = vmatprep.subr.bf16.mxu0 %v722
    %830 = vmatpush1.bf16.msra.mxu0 %v721
    %831 = vmatprep.subr.bf16.mxu0 %v724
    %832 = vmatpush1.bf16.msra.mxu0 %v723
    %833 = vmatprep.subr.bf16.mxu0 %v726
    %834 = vmatpush1.bf16.msra.mxu0 %v725
    %835 = vmatprep.subr.bf16.mxu0 %v728
    %836 = vmatpush1.bf16.msra.mxu0 %v727
    %837 = vmatprep.subr.bf16.mxu0 %v730
    %838 = vmatpush1.bf16.msra.mxu0 %v729
    %839 = vmatprep.subr.bf16.mxu0 %v732
    %840 = vmatpush1.bf16.msra.mxu0 %v731
    %841 = vmatprep.subr.bf16.mxu0 %v734
    %842 = vmatpush1.bf16.msra.mxu0 %v733
    %843 = vmatprep.subr.bf16.mxu0 %v736
    %844 = vmatpush1.bf16.msra.mxu0 %v735
    %845 = vmatprep.subr.bf16.mxu0 %v738
    %846 = vmatpush1.bf16.msra.mxu0 %v737
    %847 = vmatprep.subr.bf16.mxu0 %v740
    %848 = vmatpush1.bf16.msra.mxu0 %v739
    %849 = vmatprep.mubr.bf16.mxu0 %v127
    %850 = vmatmul.mubr.bf16.gmra.mrb[0].mxu0 %v126
    %v851 = vpop.f32.mrb[0].mxu0
    %v852 = vadd.f32 0.0, %v851
    %v853 = vpop.f32.mrb[0].mxu0
    %v854 = vadd.f32 0.0, %v853
    %v855 = vpop.f32.mrb[0].mxu0
    %v856 = vadd.f32 0.0, %v855
    %v857 = vpop.f32.mrb[0].mxu0
    %v858 = vadd.f32 0.0, %v857
    %859 = vdwg.mxu0
    %860 = vmatprep.subr.bf16.mxu0 %v742
    %861 = vmatpush1.bf16.msra.mxu0 %v741
    %862 = vmatprep.subr.bf16.mxu0 %v744
    %863 = vmatpush1.bf16.msra.mxu0 %v743
    %864 = vmatprep.subr.bf16.mxu0 %v746
    %865 = vmatpush1.bf16.msra.mxu0 %v745
    %866 = vmatprep.subr.bf16.mxu0 %v748
    %867 = vmatpush1.bf16.msra.mxu0 %v747
    %868 = vmatprep.subr.bf16.mxu0 %v750
    %869 = vmatpush1.bf16.msra.mxu0 %v749
    %870 = vmatprep.subr.bf16.mxu0 %v752
    %871 = vmatpush1.bf16.msra.mxu0 %v751
    %872 = vmatprep.subr.bf16.mxu0 %v754
    %873 = vmatpush1.bf16.msra.mxu0 %v753
    %874 = vmatprep.subr.bf16.mxu0 %v756
    %875 = vmatpush1.bf16.msra.mxu0 %v755
    %876 = vmatprep.subr.bf16.mxu0 %v758
    %877 = vmatpush1.bf16.msra.mxu0 %v757
    %878 = vmatprep.subr.bf16.mxu0 %v760
    %879 = vmatpush1.bf16.msra.mxu0 %v759
    %880 = vmatprep.subr.bf16.mxu0 %v762
    %881 = vmatpush1.bf16.msra.mxu0 %v761
    %882 = vmatprep.subr.bf16.mxu0 0
    %883 = vmatpush1.bf16.msra.mxu0 0
    %884 = vmatprep.subr.bf16.mxu0 0
    %885 = vmatpush1.bf16.msra.mxu0 0
    %886 = vmatprep.subr.bf16.mxu0 0
    %887 = vmatpush1.bf16.msra.mxu0 0
    %888 = vmatprep.subr.bf16.mxu0 0
    %889 = vmatpush1.bf16.msra.mxu0 0
    %890 = vmatprep.subr.bf16.mxu0 0
    %891 = vmatpush1.bf16.msra.mxu0 0
    %892 = vmatprep.mubr.bf16.mxu0 %v405
    %893 = vmatmul.mubr.bf16.gmra.mrb[0].mxu0 %v128
    %v894 = vpop.f32.mrb[0].mxu0
    %v895 = vadd.f32 %v852, %v894
    %v896 = vpop.f32.mrb[0].mxu0
    %v897 = vadd.f32 %v854, %v896
    %v898 = vpop.f32.mrb[0].mxu0
    %v899 = vadd.f32 %v856, %v898
    %v900 = vpop.f32.mrb[0].mxu0
    %v901 = vadd.f32 %v858, %v900
    %902 = vdwg.mxu0
    %v903 = vmax.f32 %v485, %v895
    %v904 = vmax.f32 %v487, %v897
    %v905 = vmax.f32 %v489, %v899
    %v906 = vmax.f32 %v491, %v901
    %v907 = vld [vmem:[#allocation2 + $0x10] sm:$0xff]
    %v908 = vld [vmem:[#allocation2 + $0x30] sm:$0xff]
    %v909 = vld [vmem:[#allocation2 + $0x50] sm:$0xff]
    %v910 = vld [vmem:[#allocation2 + $0x70] sm:$0xff]
    %v911 = vld [vmem:[#allocation2 + $0x90] sm:$0xff]
    %v912 = vld [vmem:[#allocation2 + $0xb0] sm:$0xff]
    %v913 = vld [vmem:[#allocation2 + $0xd0] sm:$0xff]
    %v914 = vld [vmem:[#allocation2 + $0xf0] sm:$0xff]
    %v915 = vld [vmem:[#allocation2 + $0x110] sm:$0xff]
    %v916 = vld [vmem:[#allocation2 + $0x130] sm:$0xff]
    %v917 = vld [vmem:[#allocation2 + $0x150] sm:$0xff]
    %v918 = vld [vmem:[#allocation2 + $0x170] sm:$0xff]
    %v919 = vld [vmem:[#allocation2 + $0x190] sm:$0xff]
    %v920 = vld [vmem:[#allocation2 + $0x1b0] sm:$0xff]
    %v921 = vld [vmem:[#allocation2 + $0x1d0] sm:$0xff]
    %v922 = vld [vmem:[#allocation2 + $0x1f0] sm:$0xff]
    %v923 = vld [vmem:[#allocation2 + $0x210] sm:$0xff]
    %v924 = vld [vmem:[#allocation2 + $0x230] sm:$0xff]
    %v925 = vld [vmem:[#allocation2 + $0x250] sm:$0xff]
    %v926 = vld [vmem:[#allocation2 + $0x270] sm:$0xff]
    %v927 = vld [vmem:[#allocation2 + $0x290] sm:$0xff]
    %v928 = vld [vmem:[#allocation2 + $0x2b0] sm:$0xff]
    %v929 = vld [vmem:[#allocation2 + $0x2d0] sm:$0xff]
    %v930 = vld [vmem:[#allocation2 + $0x2f0] sm:$0xff]
    %v931 = vld [vmem:[#allocation2 + $0x310] sm:$0xff]
    %v932 = vld [vmem:[#allocation2 + $0x330] sm:$0xff]
    %v933 = vld [vmem:[#allocation2 + $0x350] sm:$0xff]
    %v934 = vld [vmem:[#allocation2 + $0x370] sm:$0xff]
    %v935 = vld [vmem:[#allocation2 + $0x390] sm:$0xff]
    %v936 = vld [vmem:[#allocation2 + $0x3b0] sm:$0xff]
    %v937 = vld [vmem:[#allocation2 + $0x3d0] sm:$0xff]
    %v938 = vld [vmem:[#allocation2 + $0x3f0] sm:$0xff]
    %v939 = vld [vmem:[#allocation2 + $0x410] sm:$0xff]
    %v940 = vld [vmem:[#allocation2 + $0x430] sm:$0xff]
    %v941 = vld [vmem:[#allocation2 + $0x450] sm:$0xff]
    %v942 = vld [vmem:[#allocation2 + $0x470] sm:$0xff]
    %v943 = vld [vmem:[#allocation2 + $0x490] sm:$0xff]
    %v944 = vld [vmem:[#allocation2 + $0x4b0] sm:$0xff]
    %v945 = vld [vmem:[#allocation2 + $0x4d0] sm:$0xff]
    %v946 = vld [vmem:[#allocation2 + $0x4f0] sm:$0xff]
    %v947 = vld [vmem:[#allocation2 + $0x510] sm:$0xff]
    %v948 = vld [vmem:[#allocation2 + $0x530] sm:$0xff]
    %v949 = vld [vmem:[#allocation2 + $0x550] sm:$0xff]
    %v950 = vld [vmem:[#allocation2 + $0x570] sm:$0xff]
    %v951 = vld [vmem:[#allocation2 + $0x590] sm:$0xff]
    %v952 = vld [vmem:[#allocation2 + $0x5b0] sm:$0xff]
    %v953 = vld [vmem:[#allocation2 + $0x5d0] sm:$0xff]
    %v954 = vld [vmem:[#allocation2 + $0x5f0] sm:$0xff]
    %v955 = vld [vmem:[#allocation2 + $0x610] sm:$0xff]
    %v956 = vld [vmem:[#allocation2 + $0x630] sm:$0xff]
    %v957 = vld [vmem:[#allocation2 + $0x650] sm:$0xff]
    %v958 = vld [vmem:[#allocation2 + $0x670] sm:$0xff]
    %v959 = vld [vmem:[#allocation2 + $0x690] sm:$0xff]
    %v960 = vld [vmem:[#allocation2 + $0x6b0] sm:$0xff]
    %v1015 = vunpack.c.l.b16 %v907
    %v1016 = vunpack.c.h.b16 %v907
    %v1017 = vunpack.c.l.b16 %v908
    %v1018 = vunpack.c.h.b16 %v908
    %v1019 = vunpack.c.l.b16 %v909
    %v1020 = vunpack.c.h.b16 %v909
    %v1021 = vunpack.c.l.b16 %v910
    %v1022 = vunpack.c.h.b16 %v910
    %v1023 = vunpack.c.l.b16 %v911
    %v1024 = vunpack.c.h.b16 %v911
    %v1025 = vunpack.c.l.b16 %v912
    %v1026 = vunpack.c.h.b16 %v912
    %v1027 = vunpack.c.l.b16 %v913
    %v1028 = vunpack.c.h.b16 %v913
    %v1029 = vunpack.c.l.b16 %v914
    %v1030 = vunpack.c.h.b16 %v914
    %v1031 = vunpack.c.l.b16 %v915
    %v1032 = vunpack.c.h.b16 %v915
    %v1033 = vunpack.c.l.b16 %v916
    %v1034 = vunpack.c.h.b16 %v916
    %v1035 = vunpack.c.l.b16 %v917
    %v1036 = vunpack.c.h.b16 %v917
    %v1037 = vunpack.c.l.b16 %v918
    %v1038 = vunpack.c.h.b16 %v918
    %v1039 = vunpack.c.l.b16 %v919
    %v1040 = vunpack.c.h.b16 %v919
    %v1041 = vunpack.c.l.b16 %v920
    %v1042 = vunpack.c.h.b16 %v920
    %v1043 = vunpack.c.l.b16 %v921
    %v1044 = vunpack.c.h.b16 %v921
    %v1045 = vunpack.c.l.b16 %v922
    %v1046 = vunpack.c.h.b16 %v922
    %v1047 = vunpack.c.l.b16 %v923
    %v1048 = vunpack.c.h.b16 %v923
    %v1049 = vunpack.c.l.b16 %v924
    %v1050 = vunpack.c.h.b16 %v924
    %v1051 = vunpack.c.l.b16 %v925
    %v1052 = vunpack.c.h.b16 %v925
    %v1053 = vunpack.c.l.b16 %v926
    %v1054 = vunpack.c.h.b16 %v926
    %v1055 = vunpack.c.l.b16 %v927
    %v1056 = vunpack.c.h.b16 %v927
    %v1057 = vunpack.c.l.b16 %v928
    %v1058 = vunpack.c.h.b16 %v928
    %v1059 = vunpack.c.l.b16 %v929
    %v1060 = vunpack.c.h.b16 %v929
    %v1061 = vunpack.c.l.b16 %v930
    %v1062 = vunpack.c.h.b16 %v930
    %v1063 = vunpack.c.l.b16 %v931
    %v1064 = vunpack.c.h.b16 %v931
    %v1065 = vunpack.c.l.b16 %v932
    %v1066 = vunpack.c.h.b16 %v932
    %v1067 = vunpack.c.l.b16 %v933
    %v1068 = vunpack.c.h.b16 %v933
    %v1069 = vunpack.c.l.b16 %v934
    %v1070 = vunpack.c.h.b16 %v934
    %v1071 = vunpack.c.l.b16 %v935
    %v1072 = vunpack.c.h.b16 %v935
    %v1073 = vunpack.c.l.b16 %v936
    %v1074 = vunpack.c.h.b16 %v936
    %v1075 = vunpack.c.l.b16 %v937
    %v1076 = vunpack.c.h.b16 %v937
    %v1077 = vunpack.c.l.b16 %v938
    %v1078 = vunpack.c.h.b16 %v938
    %v1079 = vunpack.c.l.b16 %v939
    %v1080 = vunpack.c.h.b16 %v939
    %v1081 = vunpack.c.l.b16 %v940
    %v1082 = vunpack.c.h.b16 %v940
    %v1083 = vunpack.c.l.b16 %v941
    %v1084 = vunpack.c.h.b16 %v941
    %v1085 = vunpack.c.l.b16 %v942
    %v1086 = vunpack.c.h.b16 %v942
    %v1087 = vunpack.c.l.b16 %v943
    %v1088 = vunpack.c.h.b16 %v943
    %v1089 = vunpack.c.l.b16 %v944
    %v1090 = vunpack.c.h.b16 %v944
    %v1091 = vunpack.c.l.b16 %v945
    %v1092 = vunpack.c.h.b16 %v945
    %v1093 = vunpack.c.l.b16 %v946
    %v1094 = vunpack.c.h.b16 %v946
    %v1095 = vunpack.c.l.b16 %v947
    %v1096 = vunpack.c.h.b16 %v947
    %v1097 = vunpack.c.l.b16 %v948
    %v1098 = vunpack.c.h.b16 %v948
    %v1099 = vunpack.c.l.b16 %v949
    %v1100 = vunpack.c.h.b16 %v949
    %v1101 = vunpack.c.l.b16 %v950
    %v1102 = vunpack.c.h.b16 %v950
    %v1103 = vunpack.c.l.b16 %v951
    %v1104 = vunpack.c.h.b16 %v951
    %v1105 = vunpack.c.l.b16 %v952
    %v1106 = vunpack.c.h.b16 %v952
    %v1107 = vunpack.c.l.b16 %v953
    %v1108 = vunpack.c.h.b16 %v953
    %v1109 = vunpack.c.l.b16 %v954
    %v1110 = vunpack.c.h.b16 %v954
    %v1111 = vunpack.c.l.b16 %v955
    %v1112 = vunpack.c.h.b16 %v955
    %v1113 = vunpack.c.l.b16 %v956
    %v1114 = vunpack.c.h.b16 %v956
    %v1115 = vunpack.c.l.b16 %v957
    %v1116 = vunpack.c.h.b16 %v957
    %v1117 = vunpack.c.l.b16 %v958
    %v1118 = vunpack.c.h.b16 %v958
    %v1119 = vunpack.c.l.b16 %v959
    %v1120 = vunpack.c.h.b16 %v959
    %v1121 = vunpack.c.l.b16 %v960
    %v1122 = vunpack.c.h.b16 %v960
    %v1123 = vpack.c.b16 %v1017, %v1015
    %v1124 = vpack.c.b16 %v1018, %v1016
    %v1125 = vpack.c.b16 %v1021, %v1019
    %v1126 = vpack.c.b16 %v1022, %v1020
    %v1127 = vpack.c.b16 %v1025, %v1023
    %v1128 = vpack.c.b16 %v1026, %v1024
    %v1129 = vpack.c.b16 %v1029, %v1027
    %v1130 = vpack.c.b16 %v1030, %v1028
    %v1131 = vpack.c.b16 %v1033, %v1031
    %v1132 = vpack.c.b16 %v1034, %v1032
    %v1133 = vpack.c.b16 %v1037, %v1035
    %v1134 = vpack.c.b16 %v1038, %v1036
    %v1135 = vpack.c.b16 %v1041, %v1039
    %v1136 = vpack.c.b16 %v1042, %v1040
    %v1137 = vpack.c.b16 %v1045, %v1043
    %v1138 = vpack.c.b16 %v1046, %v1044
    %v1139 = vpack.c.b16 %v1049, %v1047
    %v1140 = vpack.c.b16 %v1050, %v1048
    %v1141 = vpack.c.b16 %v1053, %v1051
    %v1142 = vpack.c.b16 %v1054, %v1052
    %v1143 = vpack.c.b16 %v1057, %v1055
    %v1144 = vpack.c.b16 %v1058, %v1056
    %v1145 = vpack.c.b16 %v1061, %v1059
    %v1146 = vpack.c.b16 %v1062, %v1060
    %v1147 = vpack.c.b16 %v1065, %v1063
    %v1148 = vpack.c.b16 %v1066, %v1064
    %v1149 = vpack.c.b16 %v1069, %v1067
    %v1150 = vpack.c.b16 %v1070, %v1068
    %v1151 = vpack.c.b16 %v1073, %v1071
    %v1152 = vpack.c.b16 %v1074, %v1072
    %v1153 = vpack.c.b16 %v1077, %v1075
    %v1154 = vpack.c.b16 %v1078, %v1076
    %v1155 = vpack.c.b16 %v1081, %v1079
    %v1156 = vpack.c.b16 %v1082, %v1080
    %v1157 = vpack.c.b16 %v1085, %v1083
    %v1158 = vpack.c.b16 %v1086, %v1084
    %v1159 = vpack.c.b16 %v1089, %v1087
    %v1160 = vpack.c.b16 %v1090, %v1088
    %v1161 = vpack.c.b16 %v1093, %v1091
    %v1162 = vpack.c.b16 %v1094, %v1092
    %v1163 = vpack.c.b16 %v1097, %v1095
    %v1164 = vpack.c.b16 %v1098, %v1096
    %v1165 = vpack.c.b16 %v1101, %v1099
    %v1166 = vpack.c.b16 %v1102, %v1100
    %v1167 = vpack.c.b16 %v1105, %v1103
    %v1168 = vpack.c.b16 %v1106, %v1104
    %v1169 = vpack.c.b16 %v1109, %v1107
    %v1170 = vpack.c.b16 %v1110, %v1108
    %v1171 = vpack.c.b16 %v1113, %v1111
    %v1172 = vpack.c.b16 %v1114, %v1112
    %v1173 = vpack.c.b16 %v1117, %v1115
    %v1174 = vpack.c.b16 %v1118, %v1116
    %v1175 = vpack.c.b16 %v1121, %v1119
    %v1176 = vpack.c.b16 %v1122, %v1120
    %1231 = vmatprep.subr.bf16.mxu0 %v1124
    %1232 = vmatpush1.bf16.msra.mxu0 %v1123
    %1233 = vmatprep.subr.bf16.mxu0 %v1126
    %1234 = vmatpush1.bf16.msra.mxu0 %v1125
    %1235 = vmatprep.subr.bf16.mxu0 %v1128
    %1236 = vmatpush1.bf16.msra.mxu0 %v1127
    %1237 = vmatprep.subr.bf16.mxu0 %v1130
    %1238 = vmatpush1.bf16.msra.mxu0 %v1129
    %1239 = vmatprep.subr.bf16.mxu0 %v1132
    %1240 = vmatpush1.bf16.msra.mxu0 %v1131
    %1241 = vmatprep.subr.bf16.mxu0 %v1134
    %1242 = vmatpush1.bf16.msra.mxu0 %v1133
    %1243 = vmatprep.subr.bf16.mxu0 %v1136
    %1244 = vmatpush1.bf16.msra.mxu0 %v1135
    %1245 = vmatprep.subr.bf16.mxu0 %v1138
    %1246 = vmatpush1.bf16.msra.mxu0 %v1137
    %1247 = vmatprep.subr.bf16.mxu0 %v1140
    %1248 = vmatpush1.bf16.msra.mxu0 %v1139
    %1249 = vmatprep.subr.bf16.mxu0 %v1142
    %1250 = vmatpush1.bf16.msra.mxu0 %v1141
    %1251 = vmatprep.subr.bf16.mxu0 %v1144
    %1252 = vmatpush1.bf16.msra.mxu0 %v1143
    %1253 = vmatprep.subr.bf16.mxu0 %v1146
    %1254 = vmatpush1.bf16.msra.mxu0 %v1145
    %1255 = vmatprep.subr.bf16.mxu0 %v1148
    %1256 = vmatpush1.bf16.msra.mxu0 %v1147
    %1257 = vmatprep.subr.bf16.mxu0 %v1150
    %1258 = vmatpush1.bf16.msra.mxu0 %v1149
    %1259 = vmatprep.subr.bf16.mxu0 %v1152
    %1260 = vmatpush1.bf16.msra.mxu0 %v1151
    %1261 = vmatprep.subr.bf16.mxu0 %v1154
    %1262 = vmatpush1.bf16.msra.mxu0 %v1153
    %1263 = vmatprep.mubr.bf16.mxu0 %v127
    %1264 = vmatmul.mubr.bf16.gmra.mrb[0].mxu0 %v126
    %v1265 = vpop.f32.mrb[0].mxu0
    %v1266 = vadd.f32 0.0, %v1265
    %v1267 = vpop.f32.mrb[0].mxu0
    %v1268 = vadd.f32 0.0, %v1267
    %v1269 = vpop.f32.mrb[0].mxu0
    %v1270 = vadd.f32 0.0, %v1269
    %v1271 = vpop.f32.mrb[0].mxu0
    %v1272 = vadd.f32 0.0, %v1271
    %1273 = vdwg.mxu0
    %1274 = vmatprep.subr.bf16.mxu0 %v1156
    %1275 = vmatpush1.bf16.msra.mxu0 %v1155
    %1276 = vmatprep.subr.bf16.mxu0 %v1158
    %1277 = vmatpush1.bf16.msra.mxu0 %v1157
    %1278 = vmatprep.subr.bf16.mxu0 %v1160
    %1279 = vmatpush1.bf16.msra.mxu0 %v1159
    %1280 = vmatprep.subr.bf16.mxu0 %v1162
    %1281 = vmatpush1.bf16.msra.mxu0 %v1161
    %1282 = vmatprep.subr.bf16.mxu0 %v1164
    %1283 = vmatpush1.bf16.msra.mxu0 %v1163
    %1284 = vmatprep.subr.bf16.mxu0 %v1166
    %1285 = vmatpush1.bf16.msra.mxu0 %v1165
    %1286 = vmatprep.subr.bf16.mxu0 %v1168
    %1287 = vmatpush1.bf16.msra.mxu0 %v1167
    %1288 = vmatprep.subr.bf16.mxu0 %v1170
    %1289 = vmatpush1.bf16.msra.mxu0 %v1169
    %1290 = vmatprep.subr.bf16.mxu0 %v1172
    %1291 = vmatpush1.bf16.msra.mxu0 %v1171
    %1292 = vmatprep.subr.bf16.mxu0 %v1174
    %1293 = vmatpush1.bf16.msra.mxu0 %v1173
    %1294 = vmatprep.subr.bf16.mxu0 %v1176
    %1295 = vmatpush1.bf16.msra.mxu0 %v1175
    %1296 = vmatprep.subr.bf16.mxu0 0
    %1297 = vmatpush1.bf16.msra.mxu0 0
    %1298 = vmatprep.subr.bf16.mxu0 0
    %1299 = vmatpush1.bf16.msra.mxu0 0
    %1300 = vmatprep.subr.bf16.mxu0 0
    %1301 = vmatpush1.bf16.msra.mxu0 0
    %1302 = vmatprep.subr.bf16.mxu0 0
    %1303 = vmatpush1.bf16.msra.mxu0 0
    %1304 = vmatprep.subr.bf16.mxu0 0
    %1305 = vmatpush1.bf16.msra.mxu0 0
    %1306 = vmatprep.mubr.bf16.mxu0 %v405
    %1307 = vmatmul.mubr.bf16.gmra.mrb[0].mxu0 %v128
    %v1308 = vpop.f32.mrb[0].mxu0
    %v1309 = vadd.f32 %v1266, %v1308
    %v1310 = vpop.f32.mrb[0].mxu0
    %v1311 = vadd.f32 %v1268, %v1310
    %v1312 = vpop.f32.mrb[0].mxu0
    %v1313 = vadd.f32 %v1270, %v1312
    %v1314 = vpop.f32.mrb[0].mxu0
    %v1315 = vadd.f32 %v1272, %v1314
    %1316 = vdwg.mxu0
    %v1317 = vmax.f32 %v903, %v1309
    %v1318 = vmax.f32 %v904, %v1311
    %v1319 = vmax.f32 %v905, %v1313
    %v1320 = vmax.f32 %v906, %v1315
    %v1321 = vld [vmem:[#allocation2 + $0x18] sm:$0xff]
    %v1322 = vld [vmem:[#allocation2 + $0x38] sm:$0xff]
    %v1323 = vld [vmem:[#allocation2 + $0x58] sm:$0xff]
    %v1324 = vld [vmem:[#allocation2 + $0x78] sm:$0xff]
    %v1325 = vld [vmem:[#allocation2 + $0x98] sm:$0xff]
    %v1326 = vld [vmem:[#allocation2 + $0xb8] sm:$0xff]
    %v1327 = vld [vmem:[#allocation2 + $0xd8] sm:$0xff]
    %v1328 = vld [vmem:[#allocation2 + $0xf8] sm:$0xff]
    %v1329 = vld [vmem:[#allocation2 + $0x118] sm:$0xff]
    %v1330 = vld [vmem:[#allocation2 + $0x138] sm:$0xff]
    %v1331 = vld [vmem:[#allocation2 + $0x158] sm:$0xff]
    %v1332 = vld [vmem:[#allocation2 + $0x178] sm:$0xff]
    %v1333 = vld [vmem:[#allocation2 + $0x198] sm:$0xff]
    %v1334 = vld [vmem:[#allocation2 + $0x1b8] sm:$0xff]
    %v1335 = vld [vmem:[#allocation2 + $0x1d8] sm:$0xff]
    %v1336 = vld [vmem:[#allocation2 + $0x1f8] sm:$0xff]
    %v1337 = vld [vmem:[#allocation2 + $0x218] sm:$0xff]
    %v1338 = vld [vmem:[#allocation2 + $0x238] sm:$0xff]
    %v1339 = vld [vmem:[#allocation2 + $0x258] sm:$0xff]
    %v1340 = vld [vmem:[#allocation2 + $0x278] sm:$0xff]
    %v1341 = vld [vmem:[#allocation2 + $0x298] sm:$0xff]
    %v1342 = vld [vmem:[#allocation2 + $0x2b8] sm:$0xff]
    %v1343 = vld [vmem:[#allocation2 + $0x2d8] sm:$0xff]
    %v1344 = vld [vmem:[#allocation2 + $0x2f8] sm:$0xff]
    %v1345 = vld [vmem:[#allocation2 + $0x318] sm:$0xff]
    %v1346 = vld [vmem:[#allocation2 + $0x338] sm:$0xff]
    %v1347 = vld [vmem:[#allocation2 + $0x358] sm:$0xff]
    %v1348 = vld [vmem:[#allocation2 + $0x378] sm:$0xff]
    %v1349 = vld [vmem:[#allocation2 + $0x398] sm:$0xff]
    %v1350 = vld [vmem:[#allocation2 + $0x3b8] sm:$0xff]
    %v1351 = vld [vmem:[#allocation2 + $0x3d8] sm:$0xff]
    %v1352 = vld [vmem:[#allocation2 + $0x3f8] sm:$0xff]
    %v1353 = vld [vmem:[#allocation2 + $0x418] sm:$0xff]
    %v1354 = vld [vmem:[#allocation2 + $0x438] sm:$0xff]
    %v1355 = vld [vmem:[#allocation2 + $0x458] sm:$0xff]
    %v1356 = vld [vmem:[#allocation2 + $0x478] sm:$0xff]
    %v1357 = vld [vmem:[#allocation2 + $0x498] sm:$0xff]
    %v1358 = vld [vmem:[#allocation2 + $0x4b8] sm:$0xff]
    %v1359 = vld [vmem:[#allocation2 + $0x4d8] sm:$0xff]
    %v1360 = vld [vmem:[#allocation2 + $0x4f8] sm:$0xff]
    %v1361 = vld [vmem:[#allocation2 + $0x518] sm:$0xff]
    %v1362 = vld [vmem:[#allocation2 + $0x538] sm:$0xff]
    %v1363 = vld [vmem:[#allocation2 + $0x558] sm:$0xff]
    %v1364 = vld [vmem:[#allocation2 + $0x578] sm:$0xff]
    %v1365 = vld [vmem:[#allocation2 + $0x598] sm:$0xff]
    %v1366 = vld [vmem:[#allocation2 + $0x5b8] sm:$0xff]
    %v1367 = vld [vmem:[#allocation2 + $0x5d8] sm:$0xff]
    %v1368 = vld [vmem:[#allocation2 + $0x5f8] sm:$0xff]
    %v1369 = vld [vmem:[#allocation2 + $0x618] sm:$0xff]
    %v1370 = vld [vmem:[#allocation2 + $0x638] sm:$0xff]
    %v1371 = vld [vmem:[#allocation2 + $0x658] sm:$0xff]
    %v1372 = vld [vmem:[#allocation2 + $0x678] sm:$0xff]
    %v1373 = vld [vmem:[#allocation2 + $0x698] sm:$0xff]
    %v1374 = vld [vmem:[#allocation2 + $0x6b8] sm:$0xff]
    %v1429 = vunpack.c.l.b16 %v1321
    %v1430 = vunpack.c.h.b16 %v1321
    %v1431 = vunpack.c.l.b16 %v1322
    %v1432 = vunpack.c.h.b16 %v1322
    %v1433 = vunpack.c.l.b16 %v1323
    %v1434 = vunpack.c.h.b16 %v1323
    %v1435 = vunpack.c.l.b16 %v1324
    %v1436 = vunpack.c.h.b16 %v1324
    %v1437 = vunpack.c.l.b16 %v1325
    %v1438 = vunpack.c.h.b16 %v1325
    %v1439 = vunpack.c.l.b16 %v1326
    %v1440 = vunpack.c.h.b16 %v1326
    %v1441 = vunpack.c.l.b16 %v1327
    %v1442 = vunpack.c.h.b16 %v1327
    %v1443 = vunpack.c.l.b16 %v1328
    %v1444 = vunpack.c.h.b16 %v1328
    %v1445 = vunpack.c.l.b16 %v1329
    %v1446 = vunpack.c.h.b16 %v1329
    %v1447 = vunpack.c.l.b16 %v1330
    %v1448 = vunpack.c.h.b16 %v1330
    %v1449 = vunpack.c.l.b16 %v1331
    %v1450 = vunpack.c.h.b16 %v1331
    %v1451 = vunpack.c.l.b16 %v1332
    %v1452 = vunpack.c.h.b16 %v1332
    %v1453 = vunpack.c.l.b16 %v1333
    %v1454 = vunpack.c.h.b16 %v1333
    %v1455 = vunpack.c.l.b16 %v1334
    %v1456 = vunpack.c.h.b16 %v1334
    %v1457 = vunpack.c.l.b16 %v1335
    %v1458 = vunpack.c.h.b16 %v1335
    %v1459 = vunpack.c.l.b16 %v1336
    %v1460 = vunpack.c.h.b16 %v1336
    %v1461 = vunpack.c.l.b16 %v1337
    %v1462 = vunpack.c.h.b16 %v1337
    %v1463 = vunpack.c.l.b16 %v1338
    %v1464 = vunpack.c.h.b16 %v1338
    %v1465 = vunpack.c.l.b16 %v1339
    %v1466 = vunpack.c.h.b16 %v1339
    %v1467 = vunpack.c.l.b16 %v1340
    %v1468 = vunpack.c.h.b16 %v1340
    %v1469 = vunpack.c.l.b16 %v1341
    %v1470 = vunpack.c.h.b16 %v1341
    %v1471 = vunpack.c.l.b16 %v1342
    %v1472 = vunpack.c.h.b16 %v1342
    %v1473 = vunpack.c.l.b16 %v1343
    %v1474 = vunpack.c.h.b16 %v1343
    %v1475 = vunpack.c.l.b16 %v1344
    %v1476 = vunpack.c.h.b16 %v1344
    %v1477 = vunpack.c.l.b16 %v1345
    %v1478 = vunpack.c.h.b16 %v1345
    %v1479 = vunpack.c.l.b16 %v1346
    %v1480 = vunpack.c.h.b16 %v1346
    %v1481 = vunpack.c.l.b16 %v1347
    %v1482 = vunpack.c.h.b16 %v1347
    %v1483 = vunpack.c.l.b16 %v1348
    %v1484 = vunpack.c.h.b16 %v1348
    %v1485 = vunpack.c.l.b16 %v1349
    %v1486 = vunpack.c.h.b16 %v1349
    %v1487 = vunpack.c.l.b16 %v1350
    %v1488 = vunpack.c.h.b16 %v1350
    %v1489 = vunpack.c.l.b16 %v1351
    %v1490 = vunpack.c.h.b16 %v1351
    %v1491 = vunpack.c.l.b16 %v1352
    %v1492 = vunpack.c.h.b16 %v1352
    %v1493 = vunpack.c.l.b16 %v1353
    %v1494 = vunpack.c.h.b16 %v1353
    %v1495 = vunpack.c.l.b16 %v1354
    %v1496 = vunpack.c.h.b16 %v1354
    %v1497 = vunpack.c.l.b16 %v1355
    %v1498 = vunpack.c.h.b16 %v1355
    %v1499 = vunpack.c.l.b16 %v1356
    %v1500 = vunpack.c.h.b16 %v1356
    %v1501 = vunpack.c.l.b16 %v1357
    %v1502 = vunpack.c.h.b16 %v1357
    %v1503 = vunpack.c.l.b16 %v1358
    %v1504 = vunpack.c.h.b16 %v1358
    %v1505 = vunpack.c.l.b16 %v1359
    %v1506 = vunpack.c.h.b16 %v1359
    %v1507 = vunpack.c.l.b16 %v1360
    %v1508 = vunpack.c.h.b16 %v1360
    %v1509 = vunpack.c.l.b16 %v1361
    %v1510 = vunpack.c.h.b16 %v1361
    %v1511 = vunpack.c.l.b16 %v1362
    %v1512 = vunpack.c.h.b16 %v1362
    %v1513 = vunpack.c.l.b16 %v1363
    %v1514 = vunpack.c.h.b16 %v1363
    %v1515 = vunpack.c.l.b16 %v1364
    %v1516 = vunpack.c.h.b16 %v1364
    %v1517 = vunpack.c.l.b16 %v1365
    %v1518 = vunpack.c.h.b16 %v1365
    %v1519 = vunpack.c.l.b16 %v1366
    %v1520 = vunpack.c.h.b16 %v1366
    %v1521 = vunpack.c.l.b16 %v1367
    %v1522 = vunpack.c.h.b16 %v1367
    %v1523 = vunpack.c.l.b16 %v1368
    %v1524 = vunpack.c.h.b16 %v1368
    %v1525 = vunpack.c.l.b16 %v1369
    %v1526 = vunpack.c.h.b16 %v1369
    %v1527 = vunpack.c.l.b16 %v1370
    %v1528 = vunpack.c.h.b16 %v1370
    %v1529 = vunpack.c.l.b16 %v1371
    %v1530 = vunpack.c.h.b16 %v1371
    %v1531 = vunpack.c.l.b16 %v1372
    %v1532 = vunpack.c.h.b16 %v1372
    %v1533 = vunpack.c.l.b16 %v1373
    %v1534 = vunpack.c.h.b16 %v1373
    %v1535 = vunpack.c.l.b16 %v1374
    %v1536 = vunpack.c.h.b16 %v1374
    %v1537 = vpack.c.b16 %v1431, %v1429
    %v1538 = vpack.c.b16 %v1432, %v1430
    %v1539 = vpack.c.b16 %v1435, %v1433
    %v1540 = vpack.c.b16 %v1436, %v1434
    %v1541 = vpack.c.b16 %v1439, %v1437
    %v1542 = vpack.c.b16 %v1440, %v1438
    %v1543 = vpack.c.b16 %v1443, %v1441
    %v1544 = vpack.c.b16 %v1444, %v1442
    %v1545 = vpack.c.b16 %v1447, %v1445
    %v1546 = vpack.c.b16 %v1448, %v1446
    %v1547 = vpack.c.b16 %v1451, %v1449
    %v1548 = vpack.c.b16 %v1452, %v1450
    %v1549 = vpack.c.b16 %v1455, %v1453
    %v1550 = vpack.c.b16 %v1456, %v1454
    %v1551 = vpack.c.b16 %v1459, %v1457
    %v1552 = vpack.c.b16 %v1460, %v1458
    %v1553 = vpack.c.b16 %v1463, %v1461
    %v1554 = vpack.c.b16 %v1464, %v1462
    %v1555 = vpack.c.b16 %v1467, %v1465
    %v1556 = vpack.c.b16 %v1468, %v1466
    %v1557 = vpack.c.b16 %v1471, %v1469
    %v1558 = vpack.c.b16 %v1472, %v1470
    %v1559 = vpack.c.b16 %v1475, %v1473
    %v1560 = vpack.c.b16 %v1476, %v1474
    %v1561 = vpack.c.b16 %v1479, %v1477
    %v1562 = vpack.c.b16 %v1480, %v1478
    %v1563 = vpack.c.b16 %v1483, %v1481
    %v1564 = vpack.c.b16 %v1484, %v1482
    %v1565 = vpack.c.b16 %v1487, %v1485
    %v1566 = vpack.c.b16 %v1488, %v1486
    %v1567 = vpack.c.b16 %v1491, %v1489
    %v1568 = vpack.c.b16 %v1492, %v1490
    %v1569 = vpack.c.b16 %v1495, %v1493
    %v1570 = vpack.c.b16 %v1496, %v1494
    %v1571 = vpack.c.b16 %v1499, %v1497
    %v1572 = vpack.c.b16 %v1500, %v1498
    %v1573 = vpack.c.b16 %v1503, %v1501
    %v1574 = vpack.c.b16 %v1504, %v1502
    %v1575 = vpack.c.b16 %v1507, %v1505
    %v1576 = vpack.c.b16 %v1508, %v1506
    %v1577 = vpack.c.b16 %v1511, %v1509
    %v1578 = vpack.c.b16 %v1512, %v1510
    %v1579 = vpack.c.b16 %v1515, %v1513
    %v1580 = vpack.c.b16 %v1516, %v1514
    %v1581 = vpack.c.b16 %v1519, %v1517
    %v1582 = vpack.c.b16 %v1520, %v1518
    %v1583 = vpack.c.b16 %v1523, %v1521
    %v1584 = vpack.c.b16 %v1524, %v1522
    %v1585 = vpack.c.b16 %v1527, %v1525
    %v1586 = vpack.c.b16 %v1528, %v1526
    %v1587 = vpack.c.b16 %v1531, %v1529
    %v1588 = vpack.c.b16 %v1532, %v1530
    %v1589 = vpack.c.b16 %v1535, %v1533
    %v1590 = vpack.c.b16 %v1536, %v1534
    %1645 = vmatprep.subr.bf16.mxu0 %v1538
    %1646 = vmatpush1.bf16.msra.mxu0 %v1537
    %1647 = vmatprep.subr.bf16.mxu0 %v1540
    %1648 = vmatpush1.bf16.msra.mxu0 %v1539
    %1649 = vmatprep.subr.bf16.mxu0 %v1542
    %1650 = vmatpush1.bf16.msra.mxu0 %v1541
    %1651 = vmatprep.subr.bf16.mxu0 %v1544
    %1652 = vmatpush1.bf16.msra.mxu0 %v1543
    %1653 = vmatprep.subr.bf16.mxu0 %v1546
    %1654 = vmatpush1.bf16.msra.mxu0 %v1545
    %1655 = vmatprep.subr.bf16.mxu0 %v1548
    %1656 = vmatpush1.bf16.msra.mxu0 %v1547
    %1657 = vmatprep.subr.bf16.mxu0 %v1550
    %1658 = vmatpush1.bf16.msra.mxu0 %v1549
    %1659 = vmatprep.subr.bf16.mxu0 %v1552
    %1660 = vmatpush1.bf16.msra.mxu0 %v1551
    %1661 = vmatprep.subr.bf16.mxu0 %v1554
    %1662 = vmatpush1.bf16.msra.mxu0 %v1553
    %1663 = vmatprep.subr.bf16.mxu0 %v1556
    %1664 = vmatpush1.bf16.msra.mxu0 %v1555
    %1665 = vmatprep.subr.bf16.mxu0 %v1558
    %1666 = vmatpush1.bf16.msra.mxu0 %v1557
    %1667 = vmatprep.subr.bf16.mxu0 %v1560
    %1668 = vmatpush1.bf16.msra.mxu0 %v1559
    %1669 = vmatprep.subr.bf16.mxu0 %v1562
    %1670 = vmatpush1.bf16.msra.mxu0 %v1561
    %1671 = vmatprep.subr.bf16.mxu0 %v1564
    %1672 = vmatpush1.bf16.msra.mxu0 %v1563
    %1673 = vmatprep.subr.bf16.mxu0 %v1566
    %1674 = vmatpush1.bf16.msra.mxu0 %v1565
    %1675 = vmatprep.subr.bf16.mxu0 %v1568
    %1676 = vmatpush1.bf16.msra.mxu0 %v1567
    %1677 = vmatprep.mubr.bf16.mxu0 %v127
    %1678 = vmatmul.mubr.bf16.gmra.mrb[0].mxu0 %v126
    %v1679 = vpop.f32.mrb[0].mxu0
    %v1680 = vadd.f32 0.0, %v1679
    %v1681 = vpop.f32.mrb[0].mxu0
    %v1682 = vadd.f32 0.0, %v1681
    %v1683 = vpop.f32.mrb[0].mxu0
    %v1684 = vadd.f32 0.0, %v1683
    %v1685 = vpop.f32.mrb[0].mxu0
    %v1686 = vadd.f32 0.0, %v1685
    %1687 = vdwg.mxu0
    %1688 = vmatprep.subr.bf16.mxu0 %v1570
    %1689 = vmatpush1.bf16.msra.mxu0 %v1569
    %1690 = vmatprep.subr.bf16.mxu0 %v1572
    %1691 = vmatpush1.bf16.msra.mxu0 %v1571
    %1692 = vmatprep.subr.bf16.mxu0 %v1574
    %1693 = vmatpush1.bf16.msra.mxu0 %v1573
    %1694 = vmatprep.subr.bf16.mxu0 %v1576
    %1695 = vmatpush1.bf16.msra.mxu0 %v1575
    %1696 = vmatprep.subr.bf16.mxu0 %v1578
    %1697 = vmatpush1.bf16.msra.mxu0 %v1577
    %1698 = vmatprep.subr.bf16.mxu0 %v1580
    %1699 = vmatpush1.bf16.msra.mxu0 %v1579
    %1700 = vmatprep.subr.bf16.mxu0 %v1582
    %1701 = vmatpush1.bf16.msra.mxu0 %v1581
    %1702 = vmatprep.subr.bf16.mxu0 %v1584
    %1703 = vmatpush1.bf16.msra.mxu0 %v1583
    %1704 = vmatprep.subr.bf16.mxu0 %v1586
    %1705 = vmatpush1.bf16.msra.mxu0 %v1585
    %1706 = vmatprep.subr.bf16.mxu0 %v1588
    %1707 = vmatpush1.bf16.msra.mxu0 %v1587
    %1708 = vmatprep.subr.bf16.mxu0 %v1590
    %1709 = vmatpush1.bf16.msra.mxu0 %v1589
    %1710 = vmatprep.subr.bf16.mxu0 0
    %1711 = vmatpush1.bf16.msra.mxu0 0
    %1712 = vmatprep.subr.bf16.mxu0 0
    %1713 = vmatpush1.bf16.msra.mxu0 0
    %1714 = vmatprep.subr.bf16.mxu0 0
    %1715 = vmatpush1.bf16.msra.mxu0 0
    %1716 = vmatprep.subr.bf16.mxu0 0
    %1717 = vmatpush1.bf16.msra.mxu0 0
    %1718 = vmatprep.subr.bf16.mxu0 0
    %1719 = vmatpush1.bf16.msra.mxu0 0
    %1720 = vmatprep.mubr.bf16.mxu0 %v405
    %1721 = vmatmul.mubr.bf16.gmra.mrb[0].mxu0 %v128
    %v1722 = vpop.f32.mrb[0].mxu0
    %v1723 = vadd.f32 %v1680, %v1722
    %v1724 = vpop.f32.mrb[0].mxu0
    %v1725 = vadd.f32 %v1682, %v1724
    %v1726 = vpop.f32.mrb[0].mxu0
    %v1727 = vadd.f32 %v1684, %v1726
    %v1728 = vpop.f32.mrb[0].mxu0
    %v1729 = vadd.f32 %v1686, %v1728
    %1730 = vdwg.mxu0
    %v1731 = vmax.f32 %v1317, %v1723
    %v1732 = vmax.f32 %v1318, %v1725
    %v1733 = vmax.f32 %v1319, %v1727
    %v1734 = vmax.f32 %v1320, %v1729
    %v1735 = vld [vmem:[%s2] sm:$0x3]
    %v1737 = vlaneseq
    %v1738 = vshrl.u32 %v1737, 7
    %v1739 = vsub.s32 0, %v1738
    %v1740 = vrot.slane %v1735, %v1739
    %v1741 = vlaneseq
    %v1742 = vshrl.u32 %v1741, 7
    %v1743 = vsub.s32 1, %v1742
    %v1744 = vrot.slane %v1735, %v1743
    %v1747 = vadd.f32 %v1731, %v1740
    %v1748 = vadd.f32 %v1732, %v1744
    %v1749 = vadd.f32 %v1733, %v1740
    %v1750 = vadd.f32 %v1734, %v1744
    %vm1751 = vcmp.gt.f32.partialorder %v1747, 0.0
    %vm1752 = vcmp.gt.f32.partialorder %v1748, 0.0
    %vm1753 = vcmp.gt.f32.partialorder %v1749, 0.0
    %vm1754 = vcmp.gt.f32.partialorder %v1750, 0.0
    %v1755 = vld [vmem:[%s3] sm:$0x3]
    %v1757 = vlaneseq
    %v1758 = vshrl.u32 %v1757, 7
    %v1759 = vsub.s32 0, %v1758
    %v1760 = vrot.slane %v1755, %v1759
    %v1761 = vlaneseq
    %v1762 = vshrl.u32 %v1761, 7
    %v1763 = vsub.s32 1, %v1762
    %v1764 = vrot.slane %v1755, %v1763
    %v1767 = vmul.f32 %v1760, %v1747
    %v1768 = vmul.f32 %v1764, %v1748
    %v1769 = vmul.f32 %v1760, %v1749
    %v1770 = vmul.f32 %v1764, %v1750
    %v1771 = vsel %vm1751, %v1747, %v1767
    %v1772 = vsel %vm1752, %v1748, %v1768
    %v1773 = vsel %vm1753, %v1749, %v1769
    %v1774 = vsel %vm1754, %v1750, %v1770
    %v1775 = vpack.c.bf16 %v1773, %v1771
    %v1776 = vpack.c.bf16 %v1774, %v1772
    %v1777 = vld [vmem:[%s4] sm:$0xff]
    %v1778 = vld [vmem:[%s4 + $0x8] sm:$0xff]
    %v1779 = vld [vmem:[%s4 + $0x10] sm:$0xff]
    %v1780 = vld [vmem:[%s4 + $0x18] sm:$0xff]
    %v1781 = vld [vmem:[%s4 + $0x20] sm:$0xff]
    %v1782 = vld [vmem:[%s4 + $0x28] sm:$0xff]
    %v1783 = vld [vmem:[%s4 + $0x30] sm:$0xff]
    %v1784 = vld [vmem:[%s4 + $0x38] sm:$0xff]
    %v1785 = vld [vmem:[%s4 + $0x40] sm:$0xff]
    %v1786 = vld [vmem:[%s4 + $0x48] sm:$0xff]
    %v1787 = vld [vmem:[%s4 + $0x50] sm:$0xff]
    %v1788 = vld [vmem:[%s4 + $0x58] sm:$0xff]
    %v1789 = vld [vmem:[%s4 + $0x60] sm:$0xff]
    %v1790 = vld [vmem:[%s4 + $0x68] sm:$0xff]
    %v1791 = vld [vmem:[%s4 + $0x70] sm:$0xff]
    %v1792 = vld [vmem:[%s4 + $0x78] sm:$0xff]
    %v1793 = vld [vmem:[%s4 + $0x80] sm:$0xff]
    %v1794 = vld [vmem:[%s4 + $0x88] sm:$0xff]
    %v1795 = vld [vmem:[%s4 + $0x90] sm:$0xff]
    %v1796 = vld [vmem:[%s4 + $0x98] sm:$0xff]
    %v1797 = vld [vmem:[%s4 + $0xa0] sm:$0xff]
    %v1798 = vld [vmem:[%s4 + $0xa8] sm:$0xff]
    %v1799 = vld [vmem:[%s4 + $0xb0] sm:$0xff]
    %v1800 = vld [vmem:[%s4 + $0xb8] sm:$0xff]
    %v1801 = vld [vmem:[%s4 + $0xc0] sm:$0xff]
    %v1802 = vld [vmem:[%s4 + $0xc8] sm:$0xff]
    %v1803 = vld [vmem:[%s4 + $0xd0] sm:$0xff]
    %v1804 = vld [vmem:[%s4 + $0xd8] sm:$0xff]
    %v1805 = vld [vmem:[%s4 + $0xe0] sm:$0xff]
    %v1806 = vld [vmem:[%s4 + $0xe8] sm:$0xff]
    %v1807 = vld [vmem:[%s4 + $0xf0] sm:$0xff]
    %v1808 = vld [vmem:[%s4 + $0xf8] sm:$0xff]
    %v1809 = vld [vmem:[%s5] sm:$0x3]
    %v1811 = vlaneseq
    %v1812 = vshrl.u32 %v1811, 7
    %v1813 = vsub.s32 0, %v1812
    %v1814 = vrot.slane %v1809, %v1813
    %v1815 = vlaneseq
    %v1816 = vshrl.u32 %v1815, 7
    %v1817 = vsub.s32 1, %v1816
    %v1818 = vrot.slane %v1809, %v1817
    %v1853 = vunpack.c.l.b16 %v1777
    %v1854 = vunpack.c.h.b16 %v1777
    %v1855 = vunpack.c.l.b16 %v1778
    %v1856 = vunpack.c.h.b16 %v1778
    %v1857 = vunpack.c.l.b16 %v1779
    %v1858 = vunpack.c.h.b16 %v1779
    %v1859 = vunpack.c.l.b16 %v1780
    %v1860 = vunpack.c.h.b16 %v1780
    %v1861 = vunpack.c.l.b16 %v1781
    %v1862 = vunpack.c.h.b16 %v1781
    %v1863 = vunpack.c.l.b16 %v1782
    %v1864 = vunpack.c.h.b16 %v1782
    %v1865 = vunpack.c.l.b16 %v1783
    %v1866 = vunpack.c.h.b16 %v1783
    %v1867 = vunpack.c.l.b16 %v1784
    %v1868 = vunpack.c.h.b16 %v1784
    %v1869 = vunpack.c.l.b16 %v1785
    %v1870 = vunpack.c.h.b16 %v1785
    %v1871 = vunpack.c.l.b16 %v1786
    %v1872 = vunpack.c.h.b16 %v1786
    %v1873 = vunpack.c.l.b16 %v1787
    %v1874 = vunpack.c.h.b16 %v1787
    %v1875 = vunpack.c.l.b16 %v1788
    %v1876 = vunpack.c.h.b16 %v1788
    %v1877 = vunpack.c.l.b16 %v1789
    %v1878 = vunpack.c.h.b16 %v1789
    %v1879 = vunpack.c.l.b16 %v1790
    %v1880 = vunpack.c.h.b16 %v1790
    %v1881 = vunpack.c.l.b16 %v1791
    %v1882 = vunpack.c.h.b16 %v1791
    %v1883 = vunpack.c.l.b16 %v1792
    %v1884 = vunpack.c.h.b16 %v1792
    %v1885 = vunpack.c.l.b16 %v1793
    %v1886 = vunpack.c.h.b16 %v1793
    %v1887 = vunpack.c.l.b16 %v1794
    %v1888 = vunpack.c.h.b16 %v1794
    %v1889 = vunpack.c.l.b16 %v1795
    %v1890 = vunpack.c.h.b16 %v1795
    %v1891 = vunpack.c.l.b16 %v1796
    %v1892 = vunpack.c.h.b16 %v1796
    %v1893 = vunpack.c.l.b16 %v1797
    %v1894 = vunpack.c.h.b16 %v1797
    %v1895 = vunpack.c.l.b16 %v1798
    %v1896 = vunpack.c.h.b16 %v1798
    %v1897 = vunpack.c.l.b16 %v1799
    %v1898 = vunpack.c.h.b16 %v1799
    %v1899 = vunpack.c.l.b16 %v1800
    %v1900 = vunpack.c.h.b16 %v1800
    %v1901 = vunpack.c.l.b16 %v1801
    %v1902 = vunpack.c.h.b16 %v1801
    %v1903 = vunpack.c.l.b16 %v1802
    %v1904 = vunpack.c.h.b16 %v1802
    %v1905 = vunpack.c.l.b16 %v1803
    %v1906 = vunpack.c.h.b16 %v1803
    %v1907 = vunpack.c.l.b16 %v1804
    %v1908 = vunpack.c.h.b16 %v1804
    %v1909 = vunpack.c.l.b16 %v1805
    %v1910 = vunpack.c.h.b16 %v1805
    %v1911 = vunpack.c.l.b16 %v1806
    %v1912 = vunpack.c.h.b16 %v1806
    %v1913 = vunpack.c.l.b16 %v1807
    %v1914 = vunpack.c.h.b16 %v1807
    %v1915 = vunpack.c.l.b16 %v1808
    %v1916 = vunpack.c.h.b16 %v1808
    %v1917 = vpack.c.b16 %v1855, %v1853
    %v1918 = vpack.c.b16 %v1856, %v1854
    %v1919 = vpack.c.b16 %v1859, %v1857
    %v1920 = vpack.c.b16 %v1860, %v1858
    %v1921 = vpack.c.b16 %v1863, %v1861
    %v1922 = vpack.c.b16 %v1864, %v1862
    %v1923 = vpack.c.b16 %v1867, %v1865
    %v1924 = vpack.c.b16 %v1868, %v1866
    %v1925 = vpack.c.b16 %v1871, %v1869
    %v1926 = vpack.c.b16 %v1872, %v1870
    %v1927 = vpack.c.b16 %v1875, %v1873
    %v1928 = vpack.c.b16 %v1876, %v1874
    %v1929 = vpack.c.b16 %v1879, %v1877
    %v1930 = vpack.c.b16 %v1880, %v1878
    %v1931 = vpack.c.b16 %v1883, %v1881
    %v1932 = vpack.c.b16 %v1884, %v1882
    %v1933 = vpack.c.b16 %v1887, %v1885
    %v1934 = vpack.c.b16 %v1888, %v1886
    %v1935 = vpack.c.b16 %v1891, %v1889
    %v1936 = vpack.c.b16 %v1892, %v1890
    %v1937 = vpack.c.b16 %v1895, %v1893
    %v1938 = vpack.c.b16 %v1896, %v1894
    %v1939 = vpack.c.b16 %v1899, %v1897
    %v1940 = vpack.c.b16 %v1900, %v1898
    %v1941 = vpack.c.b16 %v1903, %v1901
    %v1942 = vpack.c.b16 %v1904, %v1902
    %v1943 = vpack.c.b16 %v1907, %v1905
    %v1944 = vpack.c.b16 %v1908, %v1906
    %v1945 = vpack.c.b16 %v1911, %v1909
    %v1946 = vpack.c.b16 %v1912, %v1910
    %v1947 = vpack.c.b16 %v1915, %v1913
    %v1948 = vpack.c.b16 %v1916, %v1914
    %1981 = vmatprep.subr.bf16.mxu0 %v1918
    %1982 = vmatpush1.bf16.msra.mxu0 %v1917
    %1983 = vmatprep.subr.bf16.mxu0 %v1920
    %1984 = vmatpush1.bf16.msra.mxu0 %v1919
    %1985 = vmatprep.subr.bf16.mxu0 %v1922
    %1986 = vmatpush1.bf16.msra.mxu0 %v1921
    %1987 = vmatprep.subr.bf16.mxu0 %v1924
    %1988 = vmatpush1.bf16.msra.mxu0 %v1923
    %1989 = vmatprep.subr.bf16.mxu0 %v1926
    %1990 = vmatpush1.bf16.msra.mxu0 %v1925
    %1991 = vmatprep.subr.bf16.mxu0 %v1928
    %1992 = vmatpush1.bf16.msra.mxu0 %v1927
    %1993 = vmatprep.subr.bf16.mxu0 %v1930
    %1994 = vmatpush1.bf16.msra.mxu0 %v1929
    %1995 = vmatprep.subr.bf16.mxu0 %v1932
    %1996 = vmatpush1.bf16.msra.mxu0 %v1931
    %1997 = vmatprep.subr.bf16.mxu0 %v1934
    %1998 = vmatpush1.bf16.msra.mxu0 %v1933
    %1999 = vmatprep.subr.bf16.mxu0 %v1936
    %2000 = vmatpush1.bf16.msra.mxu0 %v1935
    %2001 = vmatprep.subr.bf16.mxu0 %v1938
    %2002 = vmatpush1.bf16.msra.mxu0 %v1937
    %2003 = vmatprep.subr.bf16.mxu0 %v1940
    %2004 = vmatpush1.bf16.msra.mxu0 %v1939
    %2005 = vmatprep.subr.bf16.mxu0 %v1942
    %2006 = vmatpush1.bf16.msra.mxu0 %v1941
    %2007 = vmatprep.subr.bf16.mxu0 %v1944
    %2008 = vmatpush1.bf16.msra.mxu0 %v1943
    %2009 = vmatprep.subr.bf16.mxu0 %v1946
    %2010 = vmatpush1.bf16.msra.mxu0 %v1945
    %2011 = vmatprep.subr.bf16.mxu0 %v1948
    %2012 = vmatpush1.bf16.msra.mxu0 %v1947
    %2013 = vmatprep.mubr.bf16.mxu0 %v1776
    %2014 = vmatmul.mubr.bf16.gmra.mrb[0].mxu0 %v1775
    %v2015 = vpop.f32.mrb[0].mxu0
    %v2016 = vadd.f32 %v1814, %v2015
    %v2017 = vpop.f32.mrb[0].mxu0
    %v2018 = vadd.f32 %v1818, %v2017
    %v2019 = vpop.f32.mrb[0].mxu0
    %v2020 = vadd.f32 %v1814, %v2019
    %v2021 = vpop.f32.mrb[0].mxu0
    %v2022 = vadd.f32 %v1818, %v2021
    %2023 = vdwg.mxu0
    %vm2024 = vcmp.gt.f32.partialorder %v2016, 0.0
    %vm2025 = vcmp.gt.f32.partialorder %v2018, 0.0
    %vm2026 = vcmp.gt.f32.partialorder %v2020, 0.0
    %vm2027 = vcmp.gt.f32.partialorder %v2022, 0.0
    %v2028 = vld [vmem:[%s6] sm:$0x3]
    %v2030 = vlaneseq
    %v2031 = vshrl.u32 %v2030, 7
    %v2032 = vsub.s32 0, %v2031
    %v2033 = vrot.slane %v2028, %v2032
    %v2034 = vlaneseq
    %v2035 = vshrl.u32 %v2034, 7
    %v2036 = vsub.s32 1, %v2035
    %v2037 = vrot.slane %v2028, %v2036
    %v2040 = vmul.f32 %v2033, %v2016
    %v2041 = vmul.f32 %v2037, %v2018
    %v2042 = vmul.f32 %v2033, %v2020
    %v2043 = vmul.f32 %v2037, %v2022
    %v2044 = vsel %vm2024, %v2016, %v2040
    %v2045 = vsel %vm2025, %v2018, %v2041
    %v2046 = vsel %vm2026, %v2020, %v2042
    %v2047 = vsel %vm2027, %v2022, %v2043
    %v2048 = vpack.c.bf16 %v2046, %v2044
    %v2049 = vpack.c.bf16 %v2047, %v2045
    %v2050 = vld [vmem:[%s7] sm:$0xf]
    %v2051 = vld [vmem:[%s7 + $0x4] sm:$0xf]
    %v2052 = vld [vmem:[%s7 + $0x8] sm:$0xf]
    %v2053 = vld [vmem:[%s7 + $0xc] sm:$0xf]
    %v2054 = vld [vmem:[%s7 + $0x10] sm:$0xf]
    %v2055 = vld [vmem:[%s7 + $0x14] sm:$0xf]
    %v2056 = vld [vmem:[%s7 + $0x18] sm:$0xf]
    %v2057 = vld [vmem:[%s7 + $0x1c] sm:$0xf]
    %v2058 = vld [vmem:[%s7 + $0x20] sm:$0xf]
    %v2059 = vld [vmem:[%s7 + $0x24] sm:$0xf]
    %v2060 = vld [vmem:[%s7 + $0x28] sm:$0xf]
    %v2061 = vld [vmem:[%s7 + $0x2c] sm:$0xf]
    %v2062 = vld [vmem:[%s7 + $0x30] sm:$0xf]
    %v2063 = vld [vmem:[%s7 + $0x34] sm:$0xf]
    %v2064 = vld [vmem:[%s7 + $0x38] sm:$0xf]
    %v2065 = vld [vmem:[%s7 + $0x3c] sm:$0xf]
    %v2066 = vld [vmem:[%s7 + $0x40] sm:$0xf]
    %v2067 = vld [vmem:[%s7 + $0x44] sm:$0xf]
    %v2068 = vld [vmem:[%s8] sm:$0x1]
    %v2070 = vlaneseq
    %v2071 = vshrl.u32 %v2070, 7
    %v2072 = vsub.s32 0, %v2071
    %v2073 = vrot.slane %v2068, %v2072
    %v2093 = vunpack.c.l.b16 %v2050
    %v2094 = vunpack.c.l.b16 %v2051
    %v2095 = vunpack.c.l.b16 %v2052
    %v2096 = vunpack.c.l.b16 %v2053
    %v2097 = vunpack.c.l.b16 %v2054
    %v2098 = vunpack.c.l.b16 %v2055
    %v2099 = vunpack.c.l.b16 %v2056
    %v2100 = vunpack.c.l.b16 %v2057
    %v2101 = vunpack.c.l.b16 %v2058
    %v2102 = vunpack.c.l.b16 %v2059
    %v2103 = vunpack.c.l.b16 %v2060
    %v2104 = vunpack.c.l.b16 %v2061
    %v2105 = vunpack.c.l.b16 %v2062
    %v2106 = vunpack.c.l.b16 %v2063
    %v2107 = vunpack.c.l.b16 %v2064
    %v2108 = vunpack.c.l.b16 %v2065
    %v2109 = vunpack.c.l.b16 %v2066
    %v2110 = vunpack.c.l.b16 %v2067
    %v2111 = vpack.c.b16 %v2094, %v2093
    %v2112 = vpack.c.b16 %v2096, %v2095
    %v2113 = vpack.c.b16 %v2098, %v2097
    %v2114 = vpack.c.b16 %v2100, %v2099
    %v2115 = vpack.c.b16 %v2102, %v2101
    %v2116 = vpack.c.b16 %v2104, %v2103
    %v2117 = vpack.c.b16 %v2106, %v2105
    %v2118 = vpack.c.b16 %v2108, %v2107
    %v2119 = vpack.c.b16 %v2110, %v2109
    %vm2129 = vcmask 130048
    %v2131 = vsel %vm2129, %v2049, 0
    %2133 = vmatprep.subr.bf16.mxu0 0
    %2134 = vmatpush1.bf16.msra.mxu0 %v2111
    %2135 = vmatprep.subr.bf16.mxu0 0
    %2136 = vmatpush1.bf16.msra.mxu0 %v2112
    %2137 = vmatprep.subr.bf16.mxu0 0
    %2138 = vmatpush1.bf16.msra.mxu0 %v2113
    %2139 = vmatprep.subr.bf16.mxu0 0
    %2140 = vmatpush1.bf16.msra.mxu0 %v2114
    %2141 = vmatprep.subr.bf16.mxu0 0
    %2142 = vmatpush1.bf16.msra.mxu0 %v2115
    %2143 = vmatprep.subr.bf16.mxu0 0
    %2144 = vmatpush1.bf16.msra.mxu0 %v2116
    %2145 = vmatprep.subr.bf16.mxu0 0
    %2146 = vmatpush1.bf16.msra.mxu0 %v2117
    %2147 = vmatprep.subr.bf16.mxu0 0
    %2148 = vmatpush1.bf16.msra.mxu0 %v2118
    %2149 = vmatprep.subr.bf16.mxu0 0
    %2150 = vmatpush1.bf16.msra.mxu0 %v2119
    %2151 = vmatprep.subr.bf16.mxu0 0
    %2152 = vmatpush1.bf16.msra.mxu0 0
    %2153 = vmatprep.subr.bf16.mxu0 0
    %2154 = vmatpush1.bf16.msra.mxu0 0
    %2155 = vmatprep.subr.bf16.mxu0 0
    %2156 = vmatpush1.bf16.msra.mxu0 0
    %2157 = vmatprep.subr.bf16.mxu0 0
    %2158 = vmatpush1.bf16.msra.mxu0 0
    %2159 = vmatprep.subr.bf16.mxu0 0
    %2160 = vmatpush1.bf16.msra.mxu0 0
    %2161 = vmatprep.subr.bf16.mxu0 0
    %2162 = vmatpush1.bf16.msra.mxu0 0
    %2163 = vmatprep.subr.bf16.mxu0 0
    %2164 = vmatpush1.bf16.msra.mxu0 0
    %2165 = vmatprep.mubr.bf16.mxu0 %v2131
    %2166 = vmatmul.mubr.bf16.gmra.mrb[0].mxu0 %v2048
    %v2167 = vpop.f32.mrb[0].mxu0
    %v2168 = vadd.f32 %v2073, %v2167
    %v2169 = vpop.f32.mrb[0].mxu0
    %v2170 = vpop.f32.mrb[0].mxu0
    %v2171 = vadd.f32 %v2073, %v2170
    %v2172 = vpop.f32.mrb[0].mxu0
    %2173 = vdwg.mxu0
    %vm2174 = vcmp.gt.f32.partialorder %v2168, 0.0
    %vm2175 = vcmp.gt.f32.partialorder %v2171, 0.0
    %v2176 = vld [vmem:[%s9] sm:$0x1]
    %v2178 = vlaneseq
    %v2179 = vshrl.u32 %v2178, 7
    %v2180 = vsub.s32 0, %v2179
    %v2181 = vrot.slane %v2176, %v2180
    %v2183 = vmul.f32 %v2181, %v2168
    %v2184 = vmul.f32 %v2181, %v2171
    %v2185 = vsel %vm2174, %v2168, %v2183
    %v2186 = vsel %vm2175, %v2171, %v2184
    %v2187 = vpack.c.bf16 %v2186, %v2185
    %v2188 = vld [vmem:[%s10] sm:$0xf]
    %v2189 = vld [vmem:[%s10 + $0x4] sm:$0xf]
    %v2190 = vld [vmem:[%s10 + $0x8] sm:$0xf]
    %v2191 = vld [vmem:[%s10 + $0xc] sm:$0xf]
    %v2192 = vld [vmem:[%s11] sm:$0x1]
    %v2194 = vlaneseq
    %v2195 = vshrl.u32 %v2194, 7
    %v2196 = vsub.s32 0, %v2195
    %v2197 = vrot.slane %v2192, %v2196
    %v2203 = vunpack.c.l.b16 %v2188
    %v2204 = vunpack.c.l.b16 %v2189
    %v2205 = vunpack.c.l.b16 %v2190
    %v2206 = vunpack.c.l.b16 %v2191
    %v2207 = vpack.c.b16 %v2204, %v2203
    %v2208 = vpack.c.b16 %v2206, %v2205
    %vm2211 = vcmask 261120
    %v2213 = vsel %vm2211, %v2187, 0
    %2215 = vmatprep.subr.bf16.mxu0 0
    %2216 = vmatpush1.bf16.msra.mxu0 %v2207
    %2217 = vmatprep.subr.bf16.mxu0 0
    %2218 = vmatpush1.bf16.msra.mxu0 %v2208
    %2219 = vmatprep.subr.bf16.mxu0 0
    %2220 = vmatpush1.bf16.msra.mxu0 0
    %2221 = vmatprep.subr.bf16.mxu0 0
    %2222 = vmatpush1.bf16.msra.mxu0 0
    %2223 = vmatprep.subr.bf16.mxu0 0
    %2224 = vmatpush1.bf16.msra.mxu0 0
    %2225 = vmatprep.subr.bf16.mxu0 0
    %2226 = vmatpush1.bf16.msra.mxu0 0
    %2227 = vmatprep.subr.bf16.mxu0 0
    %2228 = vmatpush1.bf16.msra.mxu0 0
    %2229 = vmatprep.subr.bf16.mxu0 0
    %2230 = vmatpush1.bf16.msra.mxu0 0
    %2231 = vmatprep.subr.bf16.mxu0 0
    %2232 = vmatpush1.bf16.msra.mxu0 0
    %2233 = vmatprep.subr.bf16.mxu0 0
    %2234 = vmatpush1.bf16.msra.mxu0 0
    %2235 = vmatprep.subr.bf16.mxu0 0
    %2236 = vmatpush1.bf16.msra.mxu0 0
    %2237 = vmatprep.subr.bf16.mxu0 0
    %2238 = vmatpush1.bf16.msra.mxu0 0
    %2239 = vmatprep.subr.bf16.mxu0 0
    %2240 = vmatpush1.bf16.msra.mxu0 0
    %2241 = vmatprep.subr.bf16.mxu0 0
    %2242 = vmatpush1.bf16.msra.mxu0 0
    %2243 = vmatprep.subr.bf16.mxu0 0
    %2244 = vmatpush1.bf16.msra.mxu0 0
    %2245 = vmatprep.subr.bf16.mxu0 0
    %2246 = vmatpush1.bf16.msra.mxu0 0
    %2247 = vmatprep.mubr.bf16.mxu0 0
    %2248 = vmatmul.mubr.bf16.gmra.mrb[0].mxu0 %v2213
    %v2249 = vpop.f32.mrb[0].mxu0
    %v2250 = vadd.f32 %v2197, %v2249
    %v2251 = vpop.f32.mrb[0].mxu0
    %v2252 = vpop.f32.mrb[0].mxu0
    %v2253 = vadd.f32 %v2197, %v2252
    %v2254 = vpop.f32.mrb[0].mxu0
    %2255 = vdwg.mxu0
    %2256 = vst.msk [vmem:[%s12] sm:$0xff] %vm2129, %v2250
    %2257 = vst.msk [vmem:[%s12 + $0x8] sm:$0xff] %vm2129, %v2253
    // Predicated region
    $region54: #{pnet_forward.1} parent=1 // pred_check
      _
    $region55: #{pnet_forward.1} parent=1 // pred_check_branch
      %2259 = sbr.rel (0) target = $region57
    $region56: #{pnet_forward.1} parent=1 // pred_region
      _
    $region57: #{pnet_forward.1} parent=1 // pred_fallthru
      _
    // Predicated region
    $region58: #{pnet_forward.1} parent=1 // pred_check
      _
    $region59: #{pnet_forward.1} parent=1 // pred_check_branch
      %2261 = sbr.rel (0) target = $region61
    $region60: #{pnet_forward.1} parent=1 // pred_region
      _
    $region61: #{pnet_forward.1} parent=1 // pred_fallthru
      _
    %2262 = vsyncpa [#allocation3], 1

</llo_original>
